<compile_context>
chip_gen: v5e
topology: v5e:2x2
jax: 0.10.0
libtpu: 0.0.40
codegen_flags: <defaults>
</compile_context>

<pallas_src>
import jax
import jax.numpy as jnp
from jax import lax
from jax.experimental import pallas as pl
from jax.experimental.pallas import tpu as pltpu

_BN_EPS = 1e-5


def _round_up(x, m):
    return (x + m - 1) // m * m


def _vmem_limit_bytes(block_bytes):
    # Right-size the scoped-VMEM request from the double-buffered block footprint
    # (plus generous headroom) instead of requesting all of v7x's 64 MiB.
    need = 2 * block_bytes
    return int(min(max(8 * need, 16 * 2**20), 48 * 2**20))


def _make_conv_fn(tap_offsets, s_x):
    """Builds conv(x_ref, w_ref) -> (C_out, S_x) f32 via in-kernel tap-sum.

    x_ref: (1, C_in, S_x) bf16 ref (flattened zero-padded image, lanes = row*W_pad + col)
    w_ref: (KH*KW, C_out, C_in) f32 ref
    For tap t with flat offset d, contribution at lane p is W_t @ x[:, p + d], i.e. a
    lane-roll of x by -d followed by one small MXU matmul with f32 accumulation.
    """
    def conv_fn(x_ref, w_ref):
        xv = x_ref[0].astype(jnp.float32)            # (C_in, S_x)
        acc = None
        for t, d in enumerate(tap_offsets):
            xs = xv if d == 0 else pltpu.roll(xv, s_x - d, 1)   # out[k] = xv[k + d]
            part = lax.dot_general(
                w_ref[t], xs,
                dimension_numbers=(((1,), (0,)), ((), ())),
                preferred_element_type=jnp.float32,
            )                                         # (C_out, S_x)
            acc = part if acc is None else acc + part
        return acc
    return conv_fn


def conv_bn_prelu(x, weight, gamma, beta, prelu_a, *, stride, padding):
    """x: (N, C_in, H, W) NCHW.  weight: (C_out, C_in, KH, KW) OIHW."""
    N, C_in, H, W = x.shape
    C_out, _, KH, KW = weight.shape
    T = KH * KW
    H_pad, W_pad = H + 2 * padding, W + 2 * padding
    Ho = (H_pad - KH) // stride + 1
    Wo = (W_pad - KW) // stride + 1
    R = (Ho - 1) * stride + 1                # stride-1-granularity output rows computed
    P = R * W_pad                            # flat output extent actually consumed
    d_max = (KH - 1) * W_pad + (KW - 1)      # largest tap offset
    S_x = _round_up(_round_up(P, 128) + d_max, 128)   # padded flat lane extent
    M = N * Ho * Wo                          # BN population size per channel

    tap_offsets = tuple(i * W_pad + j for i in range(KH) for j in range(KW))
    conv_fn = _make_conv_fn(tap_offsets, S_x)

    # ---- wrapper glue: zero-pad + flatten input (no im2col blow-up, ~1x input traffic) ----
    xp = jnp.pad(x, ((0, 0), (0, 0), (padding, padding), (padding, padding)))
    x_flat = xp.reshape(N, C_in, H_pad * W_pad)
    x_flat = jnp.pad(x_flat, ((0, 0), (0, 0), (0, S_x - H_pad * W_pad)))
    x_flat = x_flat.astype(jnp.bfloat16)
    w_taps = weight.transpose(2, 3, 0, 1).reshape(T, C_out, C_in).astype(jnp.float32)

    # Validity mask over the flat lane grid: selects exactly the strided conv outputs so
    # junk columns/rows (padding width, pad lanes) contribute 0 to the batch statistics.
    pidx = jnp.arange(S_x, dtype=jnp.int32)
    row, col = pidx // W_pad, pidx % W_pad
    valid = ((row % stride == 0) & (row < Ho * stride)
             & (col % stride == 0) & (col < Wo * stride))
    mask = valid.astype(jnp.float32).reshape(1, S_x)

    # ---------------- phase 1: tap-sum conv -> per-image BN stat partials ----------------
    def stats_kernel(x_ref, w_ref, mask_ref, stats_ref):
        conv = conv_fn(x_ref, w_ref)                       # (C_out, S_x) f32
        cm = conv * mask_ref[...]                          # masked conv
        s = jnp.sum(cm, axis=1, keepdims=True)             # (C_out, 1)
        ss = jnp.sum(cm * conv, axis=1, keepdims=True)     # (C_out, 1)  (= mask * conv^2)
        stats_ref[0] = jnp.concatenate([s, ss], axis=1)    # (C_out, 2), once per image

    x_bytes = C_in * S_x * 2
    w_bytes = T * C_out * C_in * 4
    mask_bytes = S_x * 4
    conv_work_bytes = C_out * S_x * 4
    conv_flops = 2 * N * C_out * C_in * T * S_x

    stats = pl.pallas_call(
        stats_kernel,
        out_shape=jax.ShapeDtypeStruct((N, C_out, 2), jnp.float32),
        grid_spec=pltpu.PrefetchScalarGridSpec(
            num_scalar_prefetch=0,
            grid=(N,),
            in_specs=[
                pl.BlockSpec((1, C_in, S_x), lambda n: (n, 0, 0)),
                pl.BlockSpec((T, C_out, C_in), lambda n: (0, 0, 0)),
                pl.BlockSpec((1, S_x), lambda n: (0, 0)),
            ],
            out_specs=pl.BlockSpec((1, C_out, 2), lambda n: (n, 0, 0)),
        ),
        compiler_params=pltpu.CompilerParams(
            dimension_semantics=("parallel",),
            vmem_limit_bytes=_vmem_limit_bytes(
                x_bytes + w_bytes + mask_bytes + conv_work_bytes),
        ),
        cost_estimate=pl.CostEstimate(
            flops=conv_flops,
            transcendentals=0,
            bytes_accessed=N * x_bytes + w_bytes + mask_bytes + N * C_out * 2 * 4,
        ),
    )(x_flat, w_taps, mask)

    # -------- tiny wrapper reduction: global batch stats -> per-channel affine --------
    tot = stats.sum(axis=0)                                   # (C_out, 2)
    mean = tot[:, 0] / M
    var = jnp.maximum(tot[:, 1] / M - mean * mean, 0.0)       # biased variance (BN training)
    inv = lax.rsqrt(var + _BN_EPS)
    gamma_f = gamma.astype(jnp.float32)
    beta_f = beta.astype(jnp.float32)
    scale = (gamma_f * inv).reshape(C_out, 1)
    shift = (beta_f - mean * gamma_f * inv).reshape(C_out, 1)
    a1 = jnp.asarray(prelu_a, jnp.float32).reshape(1)

    # ---------------- phase 2: recompute conv -> BN affine -> PReLU ----------------
    def bn_prelu_kernel(x_ref, w_ref, scale_ref, shift_ref, a_ref, o_ref):
        conv = conv_fn(x_ref, w_ref)                       # (C_out, S_x) f32
        y = conv * scale_ref[...] + shift_ref[...]
        a = a_ref[0]
        o_ref[0] = jnp.where(y > 0, y, a * y).astype(o_ref.dtype)

    out_full = pl.pallas_call(
        bn_prelu_kernel,
        out_shape=jax.ShapeDtypeStruct((N, C_out, S_x), jnp.float32),
        grid_spec=pltpu.PrefetchScalarGridSpec(
            num_scalar_prefetch=0,
            grid=(N,),
            in_specs=[
                pl.BlockSpec((1, C_in, S_x), lambda n: (n, 0, 0)),
                pl.BlockSpec((T, C_out, C_in), lambda n: (0, 0, 0)),
                pl.BlockSpec((C_out, 1), lambda n: (0, 0)),
                pl.BlockSpec((C_out, 1), lambda n: (0, 0)),
                pl.BlockSpec(memory_space=pltpu.MemorySpace.SMEM),
            ],
            out_specs=pl.BlockSpec((1, C_out, S_x), lambda n: (n, 0, 0)),
        ),
        compiler_params=pltpu.CompilerParams(
            dimension_semantics=("parallel",),
            vmem_limit_bytes=_vmem_limit_bytes(
                x_bytes + w_bytes + 2 * C_out * 4 + conv_work_bytes),
        ),
        cost_estimate=pl.CostEstimate(
            flops=conv_flops + 4 * N * C_out * S_x,
            transcendentals=0,
            bytes_accessed=N * x_bytes + w_bytes + N * C_out * S_x * 4,
        ),
    )(x_flat, w_taps, scale, shift, a1)

    # lane-dense (N, C_out, S_x) -> NCHW with no transpose (strided slice handles stride > 1)
    out = out_full[:, :, :P].reshape(N, C_out, R, W_pad)
    out = out[:, :, ::stride, ::stride][:, :, :Ho, :Wo]
    return out


conv_bn_prelu_jit = jax.jit(conv_bn_prelu, static_argnames=("stride", "padding"))


def _reference(x, weight, gamma, beta, prelu_a, *, stride, padding):
    conv = jax.lax.conv_general_dilated(
        x, weight, (stride, stride),
        [(padding, padding), (padding, padding)],
        dimension_numbers=("NCHW", "OIHW", "NCHW"),
    )
    mean = conv.mean(axis=(0, 2, 3), keepdims=True)
    var = conv.var(axis=(0, 2, 3), keepdims=True)   # biased, as BN uses for normalization
    y = (conv - mean) * jax.lax.rsqrt(var + _BN_EPS)
    y = y * gamma.reshape(1, -1, 1, 1) + beta.reshape(1, -1, 1, 1)
    return jnp.where(y > 0, y, prelu_a * y)


if __name__ == "__main__":
    # ConvolutionalLayer(in_channels=4, out_channels=8, kernel_size=3, stride=1, padding=1)
    N, C_in, H, W = 2, 4, 16, 16
    C_out, KH, KW, stride, padding = 8, 3, 3, 1, 1

    key = jax.random.PRNGKey(0)
    kx, kw = jax.random.split(key)

    x = jax.random.normal(kx, (N, C_in, H, W), dtype=jnp.float32)
    fan_in = C_in * KH * KW
    bound = 1.0 / (fan_in ** 0.5)
    weight = jax.random.uniform(kw, (C_out, C_in, KH, KW), jnp.float32, -bound, bound)
    gamma = jnp.ones((C_out,), jnp.float32)   # BatchNorm2d weight
    beta = jnp.zeros((C_out,), jnp.float32)   # BatchNorm2d bias
    prelu_a = 0.25                            # nn.PReLU() default

    # Round inputs to bf16-representable values once so the bf16 input path and the f32
    # reference see identical inputs (the kernel accumulates in f32 either way).
    x_bf = x.astype(jnp.bfloat16).astype(jnp.float32)
    w_bf = weight.astype(jnp.bfloat16).astype(jnp.float32)

    out = conv_bn_prelu_jit(x_bf, w_bf, gamma, beta, prelu_a, stride=stride, padding=padding)
    out = jax.block_until_ready(out)

    ref = _reference(x_bf, w_bf, gamma, beta, prelu_a, stride=stride, padding=padding)
    assert out.shape == (N, C_out, H, W), out.shape
    max_err = float(jnp.abs(out - ref).max())
    assert jnp.allclose(out, ref, atol=1e-3, rtol=1e-3), max_err

    print("KERNEL_OK")
</pallas_src>

<mosaic_0001>
module attributes {stable_mosaic.version = 11 : i64} {
  func.func @stats_kernel(%arg0: i32, %arg1: memref<1x4x512xbf16, #tpu.memory_space<vmem>>, %arg2: memref<9x8x4xf32, #tpu.memory_space<vmem>>, %arg3: memref<1x512xf32, #tpu.memory_space<vmem>>, %arg4: memref<1x8x2xf32, #tpu.memory_space<vmem>>) attributes {dimension_semantics = [#tpu.dimension_semantics<parallel>], iteration_bounds = array<i64: 2>, scalar_prefetch = 0 : i64, scratch_operands = 0 : i64, tpu.core_type = #tpu.core_type<tc>, window_params = [{transform_indices = @transform_0, window_bounds = array<i64: 1, 4, 512>}, {pipeline_mode = #tpu.pipeline_mode<synchronous>, transform_indices = @transform_1, window_bounds = array<i64: 9, 8, 4>}, {pipeline_mode = #tpu.pipeline_mode<synchronous>, transform_indices = @transform_2, window_bounds = array<i64: 1, 512>}, {transform_indices = @transform_3, window_bounds = array<i64: 1, 8, 2>}]} {
    %c0 = arith.constant 0 : index
    %c0_0 = arith.constant 0 : index
    %c0_1 = arith.constant 0 : index
    %0 = vector.load %arg1[%c0, %c0_0, %c0_1] : memref<1x4x512xbf16, #tpu.memory_space<vmem>>, vector<1x4x512xbf16>
    %1 = vector.shape_cast %0 : vector<1x4x512xbf16> to vector<4x512xbf16>
    %2 = arith.extf %1 : vector<4x512xbf16> to vector<4x512xf32>
    %c0_2 = arith.constant 0 : index
    %c0_3 = arith.constant 0 : index
    %c0_4 = arith.constant 0 : index
    %3 = vector.load %arg2[%c0_2, %c0_3, %c0_4] : memref<9x8x4xf32, #tpu.memory_space<vmem>>, vector<1x8x4xf32>
    %4 = vector.shape_cast %3 : vector<1x8x4xf32> to vector<8x4xf32>
    %cst = arith.constant dense<0.000000e+00> : vector<8x512xf32>
    %5 = tpu.matmul %4, %2, %cst {dimension_numbers = #tpu.dot_dimension_numbers<[1], [0], [0], [1], [0, 0, 1, 1], [], []>} : vector<8x4xf32>, vector<4x512xf32>, vector<8x512xf32> -> vector<8x512xf32>
    %c511_i32 = arith.constant 511 : i32
    %6 = tpu.dynamic_rotate %2 by %c511_i32 dim 1 : vector<4x512xf32>, i32 -> vector<4x512xf32>
    %c1 = arith.constant 1 : index
    %c0_5 = arith.constant 0 : index
    %c0_6 = arith.constant 0 : index
    %7 = vector.load %arg2[%c1, %c0_5, %c0_6] : memref<9x8x4xf32, #tpu.memory_space<vmem>>, vector<1x8x4xf32>
    %8 = vector.shape_cast %7 : vector<1x8x4xf32> to vector<8x4xf32>
    %cst_7 = arith.constant dense<0.000000e+00> : vector<8x512xf32>
    %9 = tpu.matmul %8, %6, %cst_7 {dimension_numbers = #tpu.dot_dimension_numbers<[1], [0], [0], [1], [0, 0, 1, 1], [], []>} : vector<8x4xf32>, vector<4x512xf32>, vector<8x512xf32> -> vector<8x512xf32>
    %10 = arith.addf %5, %9 : vector<8x512xf32>
    %c510_i32 = arith.constant 510 : i32
    %11 = tpu.dynamic_rotate %2 by %c510_i32 dim 1 : vector<4x512xf32>, i32 -> vector<4x512xf32>
    %c2 = arith.constant 2 : index
    %c0_8 = arith.constant 0 : index
    %c0_9 = arith.constant 0 : index
    %12 = vector.load %arg2[%c2, %c0_8, %c0_9] : memref<9x8x4xf32, #tpu.memory_space<vmem>>, vector<1x8x4xf32>
    %13 = vector.shape_cast %12 : vector<1x8x4xf32> to vector<8x4xf32>
    %cst_10 = arith.constant dense<0.000000e+00> : vector<8x512xf32>
    %14 = tpu.matmul %13, %11, %cst_10 {dimension_numbers = #tpu.dot_dimension_numbers<[1], [0], [0], [1], [0, 0, 1, 1], [], []>} : vector<8x4xf32>, vector<4x512xf32>, vector<8x512xf32> -> vector<8x512xf32>
    %15 = arith.addf %10, %14 : vector<8x512xf32>
    %c494_i32 = arith.constant 494 : i32
    %16 = tpu.dynamic_rotate %2 by %c494_i32 dim 1 : vector<4x512xf32>, i32 -> vector<4x512xf32>
    %c3 = arith.constant 3 : index
    %c0_11 = arith.constant 0 : index
    %c0_12 = arith.constant 0 : index
    %17 = vector.load %arg2[%c3, %c0_11, %c0_12] : memref<9x8x4xf32, #tpu.memory_space<vmem>>, vector<1x8x4xf32>
    %18 = vector.shape_cast %17 : vector<1x8x4xf32> to vector<8x4xf32>
    %cst_13 = arith.constant dense<0.000000e+00> : vector<8x512xf32>
    %19 = tpu.matmul %18, %16, %cst_13 {dimension_numbers = #tpu.dot_dimension_numbers<[1], [0], [0], [1], [0, 0, 1, 1], [], []>} : vector<8x4xf32>, vector<4x512xf32>, vector<8x512xf32> -> vector<8x512xf32>
    %20 = arith.addf %15, %19 : vector<8x512xf32>
    %c493_i32 = arith.constant 493 : i32
    %21 = tpu.dynamic_rotate %2 by %c493_i32 dim 1 : vector<4x512xf32>, i32 -> vector<4x512xf32>
    %c4 = arith.constant 4 : index
    %c0_14 = arith.constant 0 : index
    %c0_15 = arith.constant 0 : index
    %22 = vector.load %arg2[%c4, %c0_14, %c0_15] : memref<9x8x4xf32, #tpu.memory_space<vmem>>, vector<1x8x4xf32>
    %23 = vector.shape_cast %22 : vector<1x8x4xf32> to vector<8x4xf32>
    %cst_16 = arith.constant dense<0.000000e+00> : vector<8x512xf32>
    %24 = tpu.matmul %23, %21, %cst_16 {dimension_numbers = #tpu.dot_dimension_numbers<[1], [0], [0], [1], [0, 0, 1, 1], [], []>} : vector<8x4xf32>, vector<4x512xf32>, vector<8x512xf32> -> vector<8x512xf32>
    %25 = arith.addf %20, %24 : vector<8x512xf32>
    %c492_i32 = arith.constant 492 : i32
    %26 = tpu.dynamic_rotate %2 by %c492_i32 dim 1 : vector<4x512xf32>, i32 -> vector<4x512xf32>
    %c5 = arith.constant 5 : index
    %c0_17 = arith.constant 0 : index
    %c0_18 = arith.constant 0 : index
    %27 = vector.load %arg2[%c5, %c0_17, %c0_18] : memref<9x8x4xf32, #tpu.memory_space<vmem>>, vector<1x8x4xf32>
    %28 = vector.shape_cast %27 : vector<1x8x4xf32> to vector<8x4xf32>
    %cst_19 = arith.constant dense<0.000000e+00> : vector<8x512xf32>
    %29 = tpu.matmul %28, %26, %cst_19 {dimension_numbers = #tpu.dot_dimension_numbers<[1], [0], [0], [1], [0, 0, 1, 1], [], []>} : vector<8x4xf32>, vector<4x512xf32>, vector<8x512xf32> -> vector<8x512xf32>
    %30 = arith.addf %25, %29 : vector<8x512xf32>
    %c476_i32 = arith.constant 476 : i32
    %31 = tpu.dynamic_rotate %2 by %c476_i32 dim 1 : vector<4x512xf32>, i32 -> vector<4x512xf32>
    %c6 = arith.constant 6 : index
    %c0_20 = arith.constant 0 : index
    %c0_21 = arith.constant 0 : index
    %32 = vector.load %arg2[%c6, %c0_20, %c0_21] : memref<9x8x4xf32, #tpu.memory_space<vmem>>, vector<1x8x4xf32>
    %33 = vector.shape_cast %32 : vector<1x8x4xf32> to vector<8x4xf32>
    %cst_22 = arith.constant dense<0.000000e+00> : vector<8x512xf32>
    %34 = tpu.matmul %33, %31, %cst_22 {dimension_numbers = #tpu.dot_dimension_numbers<[1], [0], [0], [1], [0, 0, 1, 1], [], []>} : vector<8x4xf32>, vector<4x512xf32>, vector<8x512xf32> -> vector<8x512xf32>
    %35 = arith.addf %30, %34 : vector<8x512xf32>
    %c475_i32 = arith.constant 475 : i32
    %36 = tpu.dynamic_rotate %2 by %c475_i32 dim 1 : vector<4x512xf32>, i32 -> vector<4x512xf32>
    %c7 = arith.constant 7 : index
    %c0_23 = arith.constant 0 : index
    %c0_24 = arith.constant 0 : index
    %37 = vector.load %arg2[%c7, %c0_23, %c0_24] : memref<9x8x4xf32, #tpu.memory_space<vmem>>, vector<1x8x4xf32>
    %38 = vector.shape_cast %37 : vector<1x8x4xf32> to vector<8x4xf32>
    %cst_25 = arith.constant dense<0.000000e+00> : vector<8x512xf32>
    %39 = tpu.matmul %38, %36, %cst_25 {dimension_numbers = #tpu.dot_dimension_numbers<[1], [0], [0], [1], [0, 0, 1, 1], [], []>} : vector<8x4xf32>, vector<4x512xf32>, vector<8x512xf32> -> vector<8x512xf32>
    %40 = arith.addf %35, %39 : vector<8x512xf32>
    %c474_i32 = arith.constant 474 : i32
    %41 = tpu.dynamic_rotate %2 by %c474_i32 dim 1 : vector<4x512xf32>, i32 -> vector<4x512xf32>
    %c8 = arith.constant 8 : index
    %c0_26 = arith.constant 0 : index
    %c0_27 = arith.constant 0 : index
    %42 = vector.load %arg2[%c8, %c0_26, %c0_27] : memref<9x8x4xf32, #tpu.memory_space<vmem>>, vector<1x8x4xf32>
    %43 = vector.shape_cast %42 : vector<1x8x4xf32> to vector<8x4xf32>
    %cst_28 = arith.constant dense<0.000000e+00> : vector<8x512xf32>
    %44 = tpu.matmul %43, %41, %cst_28 {dimension_numbers = #tpu.dot_dimension_numbers<[1], [0], [0], [1], [0, 0, 1, 1], [], []>} : vector<8x4xf32>, vector<4x512xf32>, vector<8x512xf32> -> vector<8x512xf32>
    %45 = arith.addf %40, %44 : vector<8x512xf32>
    %c0_29 = arith.constant 0 : index
    %c0_30 = arith.constant 0 : index
    %46 = vector.load %arg3[%c0_29, %c0_30] : memref<1x512xf32, #tpu.memory_space<vmem>>, vector<1x512xf32>
    %47 = vector.broadcast %46 : vector<1x512xf32> to vector<8x512xf32>
    %48 = arith.mulf %45, %47 : vector<8x512xf32>
    %cst_31 = arith.constant dense<0.000000e+00> : vector<8xf32>
    %49 = vector.multi_reduction <add>, %48, %cst_31 [1] : vector<8x512xf32> to vector<8xf32>
    %50 = vector.shape_cast %49 : vector<8xf32> to vector<8x1xf32>
    %51 = arith.mulf %48, %45 : vector<8x512xf32>
    %cst_32 = arith.constant dense<0.000000e+00> : vector<8xf32>
    %52 = vector.multi_reduction <add>, %51, %cst_32 [1] : vector<8x512xf32> to vector<8xf32>
    %53 = vector.shape_cast %52 : vector<8xf32> to vector<8x1xf32>
    %54 = tpu.concatenate %50, %53 in 1 : vector<8x1xf32>, vector<8x1xf32> -> vector<8x2xf32>
    %c0_33 = arith.constant 0 : index
    %c0_34 = arith.constant 0 : index
    %c0_35 = arith.constant 0 : index
    %55 = vector.load %arg4[%c0_33, %c0_34, %c0_35] : memref<1x8x2xf32, #tpu.memory_space<vmem>>, vector<1x8x2xf32>
    %56 = vector.shape_cast %55 : vector<1x8x2xf32> to vector<8x2xf32>
    %57 = vector.shape_cast %54 : vector<8x2xf32> to vector<1x8x2xf32>
    tpu.vector_store %arg4[%c0_33, %c0_34, %c0_35], %57 {strides = array<i32>} : memref<1x8x2xf32, #tpu.memory_space<vmem>>, vector<1x8x2xf32>,
    return
  }
  func.func @transform_0(%arg0: i32) -> (i32, i32, i32) {
    %c0_i32 = arith.constant 0 : i32
    %c0_i32_0 = arith.constant 0 : i32
    %c0_i32_1 = arith.constant 0 : i32
    return %arg0, %c0_i32, %c0_i32_0 : i32, i32, i32
  }
  func.func @transform_1(%arg0: i32) -> (i32, i32, i32) {
    %c0_i32 = arith.constant 0 : i32
    %c0_i32_0 = arith.constant 0 : i32
    %c0_i32_1 = arith.constant 0 : i32
    %c0_i32_2 = arith.constant 0 : i32
    return %c0_i32, %c0_i32_0, %c0_i32_1 : i32, i32, i32
  }
  func.func @transform_2(%arg0: i32) -> (i32, i32) {
    %c0_i32 = arith.constant 0 : i32
    %c0_i32_0 = arith.constant 0 : i32
    %c0_i32_1 = arith.constant 0 : i32
    return %c0_i32, %c0_i32_0 : i32, i32
  }
  func.func @transform_3(%arg0: i32) -> (i32, i32, i32) {
    %c0_i32 = arith.constant 0 : i32
    %c0_i32_0 = arith.constant 0 : i32
    %c0_i32_1 = arith.constant 0 : i32
    return %arg0, %c0_i32, %c0_i32_0 : i32, i32, i32
  }
}

module attributes {stable_mosaic.version = 11 : i64} {
  func.func @bn_prelu_kernel(%arg0: i32, %arg1: memref<1x4x512xbf16, #tpu.memory_space<vmem>>, %arg2: memref<9x8x4xf32, #tpu.memory_space<vmem>>, %arg3: memref<8x1xf32, #tpu.memory_space<vmem>>, %arg4: memref<8x1xf32, #tpu.memory_space<vmem>>, %arg5: memref<1xf32, #tpu.memory_space<smem>>, %arg6: memref<1x8x512xf32, #tpu.memory_space<vmem>>) attributes {dimension_semantics = [#tpu.dimension_semantics<parallel>], iteration_bounds = array<i64: 2>, scalar_prefetch = 0 : i64, scratch_operands = 0 : i64, tpu.core_type = #tpu.core_type<tc>, window_params = [{transform_indices = @transform_0, window_bounds = array<i64: 1, 4, 512>}, {pipeline_mode = #tpu.pipeline_mode<synchronous>, transform_indices = @transform_1, window_bounds = array<i64: 9, 8, 4>}, {pipeline_mode = #tpu.pipeline_mode<synchronous>, transform_indices = @transform_2, window_bounds = array<i64: 8, 1>}, {pipeline_mode = #tpu.pipeline_mode<synchronous>, transform_indices = @transform_3, window_bounds = array<i64: 8, 1>}, {transform_indices = @transform_4, window_bounds = array<i64: 1>}, {transform_indices = @transform_5, window_bounds = array<i64: 1, 8, 512>}]} {
    %c0 = arith.constant 0 : index
    %c0_0 = arith.constant 0 : index
    %c0_1 = arith.constant 0 : index
    %0 = vector.load %arg1[%c0, %c0_0, %c0_1] : memref<1x4x512xbf16, #tpu.memory_space<vmem>>, vector<1x4x512xbf16>
    %1 = vector.shape_cast %0 : vector<1x4x512xbf16> to vector<4x512xbf16>
    %2 = arith.extf %1 : vector<4x512xbf16> to vector<4x512xf32>
    %c0_2 = arith.constant 0 : index
    %c0_3 = arith.constant 0 : index
    %c0_4 = arith.constant 0 : index
    %3 = vector.load %arg2[%c0_2, %c0_3, %c0_4] : memref<9x8x4xf32, #tpu.memory_space<vmem>>, vector<1x8x4xf32>
    %4 = vector.shape_cast %3 : vector<1x8x4xf32> to vector<8x4xf32>
    %cst = arith.constant dense<0.000000e+00> : vector<8x512xf32>
    %5 = tpu.matmul %4, %2, %cst {dimension_numbers = #tpu.dot_dimension_numbers<[1], [0], [0], [1], [0, 0, 1, 1], [], []>} : vector<8x4xf32>, vector<4x512xf32>, vector<8x512xf32> -> vector<8x512xf32>
    %c511_i32 = arith.constant 511 : i32
    %6 = tpu.dynamic_rotate %2 by %c511_i32 dim 1 : vector<4x512xf32>, i32 -> vector<4x512xf32>
    %c1 = arith.constant 1 : index
    %c0_5 = arith.constant 0 : index
    %c0_6 = arith.constant 0 : index
    %7 = vector.load %arg2[%c1, %c0_5, %c0_6] : memref<9x8x4xf32, #tpu.memory_space<vmem>>, vector<1x8x4xf32>
    %8 = vector.shape_cast %7 : vector<1x8x4xf32> to vector<8x4xf32>
    %cst_7 = arith.constant dense<0.000000e+00> : vector<8x512xf32>
    %9 = tpu.matmul %8, %6, %cst_7 {dimension_numbers = #tpu.dot_dimension_numbers<[1], [0], [0], [1], [0, 0, 1, 1], [], []>} : vector<8x4xf32>, vector<4x512xf32>, vector<8x512xf32> -> vector<8x512xf32>
    %10 = arith.addf %5, %9 : vector<8x512xf32>
    %c510_i32 = arith.constant 510 : i32
    %11 = tpu.dynamic_rotate %2 by %c510_i32 dim 1 : vector<4x512xf32>, i32 -> vector<4x512xf32>
    %c2 = arith.constant 2 : index
    %c0_8 = arith.constant 0 : index
    %c0_9 = arith.constant 0 : index
    %12 = vector.load %arg2[%c2, %c0_8, %c0_9] : memref<9x8x4xf32, #tpu.memory_space<vmem>>, vector<1x8x4xf32>
    %13 = vector.shape_cast %12 : vector<1x8x4xf32> to vector<8x4xf32>
    %cst_10 = arith.constant dense<0.000000e+00> : vector<8x512xf32>
    %14 = tpu.matmul %13, %11, %cst_10 {dimension_numbers = #tpu.dot_dimension_numbers<[1], [0], [0], [1], [0, 0, 1, 1], [], []>} : vector<8x4xf32>, vector<4x512xf32>, vector<8x512xf32> -> vector<8x512xf32>
    %15 = arith.addf %10, %14 : vector<8x512xf32>
    %c494_i32 = arith.constant 494 : i32
    %16 = tpu.dynamic_rotate %2 by %c494_i32 dim 1 : vector<4x512xf32>, i32 -> vector<4x512xf32>
    %c3 = arith.constant 3 : index
    %c0_11 = arith.constant 0 : index
    %c0_12 = arith.constant 0 : index
    %17 = vector.load %arg2[%c3, %c0_11, %c0_12] : memref<9x8x4xf32, #tpu.memory_space<vmem>>, vector<1x8x4xf32>
    %18 = vector.shape_cast %17 : vector<1x8x4xf32> to vector<8x4xf32>
    %cst_13 = arith.constant dense<0.000000e+00> : vector<8x512xf32>
    %19 = tpu.matmul %18, %16, %cst_13 {dimension_numbers = #tpu.dot_dimension_numbers<[1], [0], [0], [1], [0, 0, 1, 1], [], []>} : vector<8x4xf32>, vector<4x512xf32>, vector<8x512xf32> -> vector<8x512xf32>
    %20 = arith.addf %15, %19 : vector<8x512xf32>
    %c493_i32 = arith.constant 493 : i32
    %21 = tpu.dynamic_rotate %2 by %c493_i32 dim 1 : vector<4x512xf32>, i32 -> vector<4x512xf32>
    %c4 = arith.constant 4 : index
    %c0_14 = arith.constant 0 : index
    %c0_15 = arith.constant 0 : index
    %22 = vector.load %arg2[%c4, %c0_14, %c0_15] : memref<9x8x4xf32, #tpu.memory_space<vmem>>, vector<1x8x4xf32>
    %23 = vector.shape_cast %22 : vector<1x8x4xf32> to vector<8x4xf32>
    %cst_16 = arith.constant dense<0.000000e+00> : vector<8x512xf32>
    %24 = tpu.matmul %23, %21, %cst_16 {dimension_numbers = #tpu.dot_dimension_numbers<[1], [0], [0], [1], [0, 0, 1, 1], [], []>} : vector<8x4xf32>, vector<4x512xf32>, vector<8x512xf32> -> vector<8x512xf32>
    %25 = arith.addf %20, %24 : vector<8x512xf32>
    %c492_i32 = arith.constant 492 : i32
    %26 = tpu.dynamic_rotate %2 by %c492_i32 dim 1 : vector<4x512xf32>, i32 -> vector<4x512xf32>
    %c5 = arith.constant 5 : index
    %c0_17 = arith.constant 0 : index
    %c0_18 = arith.constant 0 : index
    %27 = vector.load %arg2[%c5, %c0_17, %c0_18] : memref<9x8x4xf32, #tpu.memory_space<vmem>>, vector<1x8x4xf32>
    %28 = vector.shape_cast %27 : vector<1x8x4xf32> to vector<8x4xf32>
    %cst_19 = arith.constant dense<0.000000e+00> : vector<8x512xf32>
    %29 = tpu.matmul %28, %26, %cst_19 {dimension_numbers = #tpu.dot_dimension_numbers<[1], [0], [0], [1], [0, 0, 1, 1], [], []>} : vector<8x4xf32>, vector<4x512xf32>, vector<8x512xf32> -> vector<8x512xf32>
    %30 = arith.addf %25, %29 : vector<8x512xf32>
    %c476_i32 = arith.constant 476 : i32
    %31 = tpu.dynamic_rotate %2 by %c476_i32 dim 1 : vector<4x512xf32>, i32 -> vector<4x512xf32>
    %c6 = arith.constant 6 : index
    %c0_20 = arith.constant 0 : index
    %c0_21 = arith.constant 0 : index
    %32 = vector.load %arg2[%c6, %c0_20, %c0_21] : memref<9x8x4xf32, #tpu.memory_space<vmem>>, vector<1x8x4xf32>
    %33 = vector.shape_cast %32 : vector<1x8x4xf32> to vector<8x4xf32>
    %cst_22 = arith.constant dense<0.000000e+00> : vector<8x512xf32>
    %34 = tpu.matmul %33, %31, %cst_22 {dimension_numbers = #tpu.dot_dimension_numbers<[1], [0], [0], [1], [0, 0, 1, 1], [], []>} : vector<8x4xf32>, vector<4x512xf32>, vector<8x512xf32> -> vector<8x512xf32>
    %35 = arith.addf %30, %34 : vector<8x512xf32>
    %c475_i32 = arith.constant 475 : i32
    %36 = tpu.dynamic_rotate %2 by %c475_i32 dim 1 : vector<4x512xf32>, i32 -> vector<4x512xf32>
    %c7 = arith.constant 7 : index
    %c0_23 = arith.constant 0 : index
    %c0_24 = arith.constant 0 : index
    %37 = vector.load %arg2[%c7, %c0_23, %c0_24] : memref<9x8x4xf32, #tpu.memory_space<vmem>>, vector<1x8x4xf32>
    %38 = vector.shape_cast %37 : vector<1x8x4xf32> to vector<8x4xf32>
    %cst_25 = arith.constant dense<0.000000e+00> : vector<8x512xf32>
    %39 = tpu.matmul %38, %36, %cst_25 {dimension_numbers = #tpu.dot_dimension_numbers<[1], [0], [0], [1], [0, 0, 1, 1], [], []>} : vector<8x4xf32>, vector<4x512xf32>, vector<8x512xf32> -> vector<8x512xf32>
    %40 = arith.addf %35, %39 : vector<8x512xf32>
    %c474_i32 = arith.constant 474 : i32
    %41 = tpu.dynamic_rotate %2 by %c474_i32 dim 1 : vector<4x512xf32>, i32 -> vector<4x512xf32>
    %c8 = arith.constant 8 : index
    %c0_26 = arith.constant 0 : index
    %c0_27 = arith.constant 0 : index
    %42 = vector.load %arg2[%c8, %c0_26, %c0_27] : memref<9x8x4xf32, #tpu.memory_space<vmem>>, vector<1x8x4xf32>
    %43 = vector.shape_cast %42 : vector<1x8x4xf32> to vector<8x4xf32>
    %cst_28 = arith.constant dense<0.000000e+00> : vector<8x512xf32>
    %44 = tpu.matmul %43, %41, %cst_28 {dimension_numbers = #tpu.dot_dimension_numbers<[1], [0], [0], [1], [0, 0, 1, 1], [], []>} : vector<8x4xf32>, vector<4x512xf32>, vector<8x512xf32> -> vector<8x512xf32>
    %45 = arith.addf %40, %44 : vector<8x512xf32>
    %c0_29 = arith.constant 0 : index
    %c0_30 = arith.constant 0 : index
    %46 = vector.load %arg3[%c0_29, %c0_30] : memref<8x1xf32, #tpu.memory_space<vmem>>, vector<8x1xf32>
    %47 = vector.broadcast %46 : vector<8x1xf32> to vector<8x512xf32>
    %48 = arith.mulf %45, %47 : vector<8x512xf32>
    %c0_31 = arith.constant 0 : index
    %c0_32 = arith.constant 0 : index
    %49 = vector.load %arg4[%c0_31, %c0_32] : memref<8x1xf32, #tpu.memory_space<vmem>>, vector<8x1xf32>
    %50 = vector.broadcast %49 : vector<8x1xf32> to vector<8x512xf32>
    %51 = arith.addf %48, %50 : vector<8x512xf32>
    %c0_33 = arith.constant 0 : index
    %52 = memref.load %arg5[%c0_33] : memref<1xf32, #tpu.memory_space<smem>>
    %cst_34 = arith.constant 0.000000e+00 : f32
    %53 = vector.broadcast %cst_34 : f32 to vector<8x512xf32>
    %54 = arith.cmpf ogt, %51, %53 : vector<8x512xf32>
    %55 = vector.broadcast %52 : f32 to vector<8x512xf32>
    %56 = arith.mulf %55, %51 : vector<8x512xf32>
    %57 = arith.select %54, %51, %56 : vector<8x512xi1>, vector<8x512xf32>
    %c0_35 = arith.constant 0 : index
    %c0_36 = arith.constant 0 : index
    %c0_37 = arith.constant 0 : index
    %58 = vector.load %arg6[%c0_35, %c0_36, %c0_37] : memref<1x8x512xf32, #tpu.memory_space<vmem>>, vector<1x8x512xf32>
    %59 = vector.shape_cast %58 : vector<1x8x512xf32> to vector<8x512xf32>
    %60 = vector.shape_cast %57 : vector<8x512xf32> to vector<1x8x512xf32>
    tpu.vector_store %arg6[%c0_35, %c0_36, %c0_37], %60 {strides = array<i32>} : memref<1x8x512xf32, #tpu.memory_space<vmem>>, vector<1x8x512xf32>,
    return
  }
  func.func @transform_0(%arg0: i32) -> (i32, i32, i32) {
    %c0_i32 = arith.constant 0 : i32
    %c0_i32_0 = arith.constant 0 : i32
    %c0_i32_1 = arith.constant 0 : i32
    return %arg0, %c0_i32, %c0_i32_0 : i32, i32, i32
  }
  func.func @transform_1(%arg0: i32) -> (i32, i32, i32) {
    %c0_i32 = arith.constant 0 : i32
    %c0_i32_0 = arith.constant 0 : i32
    %c0_i32_1 = arith.constant 0 : i32
    %c0_i32_2 = arith.constant 0 : i32
    return %c0_i32, %c0_i32_0, %c0_i32_1 : i32, i32, i32
  }
  func.func @transform_2(%arg0: i32) -> (i32, i32) {
    %c0_i32 = arith.constant 0 : i32
    %c0_i32_0 = arith.constant 0 : i32
    %c0_i32_1 = arith.constant 0 : i32
    return %c0_i32, %c0_i32_0 : i32, i32
  }
  func.func @transform_3(%arg0: i32) -> (i32, i32) {
    %c0_i32 = arith.constant 0 : i32
    %c0_i32_0 = arith.constant 0 : i32
    %c0_i32_1 = arith.constant 0 : i32
    return %c0_i32, %c0_i32_0 : i32, i32
  }
  func.func @transform_4(%arg0: i32) -> i32 {
    %c0_i32 = arith.constant 0 : i32
    %c0_i32_0 = arith.constant 0 : i32
    return %c0_i32 : i32
  }
  func.func @transform_5(%arg0: i32) -> (i32, i32, i32) {
    %c0_i32 = arith.constant 0 : i32
    %c0_i32_0 = arith.constant 0 : i32
    %c0_i32_1 = arith.constant 0 : i32
    return %arg0, %c0_i32, %c0_i32_0 : i32, i32, i32
  }
}

</mosaic_0001>

<llo_original>
// kernel: conv_bn_prelu.3
$region0: #{conv_bn_prelu.3}
  #allocation0 [shape = 'u32[]', space=smem, size = 0x4, offset = 0x4, fixed_abs, tag = 'smem constant byte address 0x4 - core index']
  #allocation1 [shape = 'u32[72,128]{1,0:T(1,128)}', space=vmem, size = 0x9000, scoped, tag = 'internal scratch']
  #allocation2 [shape = 'f32[1]{0:T(128)S(6)}', space=smem, size = 0x200, scoped, tag = 'scoped memory for conv_bn_prelu.3']
  %s0 = inlined_call_operand.vmem [shape: bf16[2,4,512], index: 0, kind: input, shape index: {}]
  %s1 = inlined_call_operand.vmem [shape: f32[9,8,4], index: 1, kind: input, shape index: {}]
  %s2 = inlined_call_operand.vmem [shape: f32[8,1], index: 2, kind: input, shape index: {}]
  %s3 = inlined_call_operand.vmem [shape: f32[8,1], index: 3, kind: input, shape index: {}]
  %s4 = inlined_call_operand.<no memory space> [shape: f32[1], index: 4, kind: input, shape index: {}]
  %s5 = inlined_call_operand.vmem [shape: f32[2,8,512], index: 5, kind: output, shape index: {}]
  %s6 = sld [smem:[#allocation0]]
  $region53: #{conv_bn_prelu.3} parent=0
    _
  %s8 = ssub.s32 1, %s6
  %s9 = scalar_select 0, %s8, %s6
  %10 = sst [smem:[#allocation2]] %s4
  loop: start=0, step=1, limit=4
  $region2: #{conv_bn_prelu.3} parent=0 // loop_pre_header
    _
  $region3: #{conv_bn_prelu.3} parent=0 // loop_header
    %s12 = sphi 0, %s16
    %p13 = scmp.ge.s32.totalorder %s12, 4
    %s22 = sphi 0, %s24
    %s25 = sphi 0, %s22
    %s26 = sphi 0, %s25
    %s42 = sphi 0, %s26
    %s46 = sphi 0, %s46
    %s48 = sphi 0, %s46
    %s49 = sphi 0, %s48
    %s63 = sphi 0, %s49
    %s67 = sphi 0, %s67
    %s69 = sphi 0, %s67
    %s70 = sphi 0, %s69
    %s84 = sphi 0, %s70
    %s88 = sphi 0, %s88
    %s90 = sphi 0, %s88
    %s91 = sphi 0, %s90
    %s105 = sphi 0, %s91
    %s109 = sphi 0, %s109
    %s111 = sphi 0, %s109
    %s112 = sphi 0, %s111
    %s126 = sphi 0, %s112
    %s132 = sphi 0, %s134
    %s135 = sphi 0, %s132
    %s136 = sphi 0, %s135
    %s152 = sphi 0, %s136
  $region4: #{conv_bn_prelu.3} parent=0 // loop_header_branch
    %15 = sbr.rel (%p13) target = $region8
  $region5: #{conv_bn_prelu.3} parent=0 // loop_body
    %s17 = ssub.s32 %s12, 1
    %s18 = ssub.s32 %s12, 2
    %s19 = sadd.s32 %s12, 1
    %s20 = ssub.s32 %s12, %s19
    %p21 = scmp.eq.s32.totalorder %s20, 0
    %s23 = sadd.s32 %s22, 1
    %s24 = scalar_select %p21, %s22, %s23
    %p27 = pneg %p21
    %p28 = scmp.eq.s32.totalorder %s12, 1
    %p29 = por %p27, %p28
    %p30 = scmp.ne.s32.totalorder %s22, %s25
    %p31 = scmp.eq.s32.totalorder %s12, 0
    %p32 = por %p30, %p31
    %p33 = scmp.ne.s32.totalorder %s22, %s25
    %p34 = scmp.eq.s32.totalorder %s17, 1
    %p35 = por %p33, %p34
    %p36 = scmp.ne.s32.totalorder %s25, %s26
    %p37 = scmp.eq.s32.totalorder %s17, 0
    %p38 = por %p36, %p37
    %p39 = scmp.ne.s32.totalorder %s25, %s26
    %p40 = scmp.eq.s32.totalorder %s18, 1
    %p41 = por %p39, %p40
    %p43 = scmp.ne.s32.totalorder %s26, %s42
    %p44 = scmp.eq.s32.totalorder %s18, 0
    %p45 = por %p43, %p44
    %s47 = sadd.s32 %s46, 1
    %p50 = scmp.eq.s32.totalorder %s12, 1
    %p51 = scmp.ne.s32.totalorder %s46, %s48
    %p52 = scmp.eq.s32.totalorder %s12, 0
    %p53 = por %p51, %p52
    %p54 = scmp.ne.s32.totalorder %s46, %s48
    %p55 = scmp.eq.s32.totalorder %s17, 1
    %p56 = por %p54, %p55
    %p57 = scmp.ne.s32.totalorder %s48, %s49
    %p58 = scmp.eq.s32.totalorder %s17, 0
    %p59 = por %p57, %p58
    %p60 = scmp.ne.s32.totalorder %s48, %s49
    %p61 = scmp.eq.s32.totalorder %s18, 1
    %p62 = por %p60, %p61
    %p64 = scmp.ne.s32.totalorder %s49, %s63
    %p65 = scmp.eq.s32.totalorder %s18, 0
    %p66 = por %p64, %p65
    %s68 = sadd.s32 %s67, 1
    %p71 = scmp.eq.s32.totalorder %s12, 1
    %p72 = scmp.ne.s32.totalorder %s67, %s69
    %p73 = scmp.eq.s32.totalorder %s12, 0
    %p74 = por %p72, %p73
    %p75 = scmp.ne.s32.totalorder %s67, %s69
    %p76 = scmp.eq.s32.totalorder %s17, 1
    %p77 = por %p75, %p76
    %p78 = scmp.ne.s32.totalorder %s69, %s70
    %p79 = scmp.eq.s32.totalorder %s17, 0
    %p80 = por %p78, %p79
    %p81 = scmp.ne.s32.totalorder %s69, %s70
    %p82 = scmp.eq.s32.totalorder %s18, 1
    %p83 = por %p81, %p82
    %p85 = scmp.ne.s32.totalorder %s70, %s84
    %p86 = scmp.eq.s32.totalorder %s18, 0
    %p87 = por %p85, %p86
    %s89 = sadd.s32 %s88, 1
    %p92 = scmp.eq.s32.totalorder %s12, 1
    %p93 = scmp.ne.s32.totalorder %s88, %s90
    %p94 = scmp.eq.s32.totalorder %s12, 0
    %p95 = por %p93, %p94
    %p96 = scmp.ne.s32.totalorder %s88, %s90
    %p97 = scmp.eq.s32.totalorder %s17, 1
    %p98 = por %p96, %p97
    %p99 = scmp.ne.s32.totalorder %s90, %s91
    %p100 = scmp.eq.s32.totalorder %s17, 0
    %p101 = por %p99, %p100
    %p102 = scmp.ne.s32.totalorder %s90, %s91
    %p103 = scmp.eq.s32.totalorder %s18, 1
    %p104 = por %p102, %p103
    %p106 = scmp.ne.s32.totalorder %s91, %s105
    %p107 = scmp.eq.s32.totalorder %s18, 0
    %p108 = por %p106, %p107
    %s110 = sadd.s32 %s109, 1
    %p113 = scmp.eq.s32.totalorder %s12, 1
    %p114 = scmp.ne.s32.totalorder %s109, %s111
    %p115 = scmp.eq.s32.totalorder %s12, 0
    %p116 = por %p114, %p115
    %p117 = scmp.ne.s32.totalorder %s109, %s111
    %p118 = scmp.eq.s32.totalorder %s17, 1
    %p119 = por %p117, %p118
    %p120 = scmp.ne.s32.totalorder %s111, %s112
    %p121 = scmp.eq.s32.totalorder %s17, 0
    %p122 = por %p120, %p121
    %p123 = scmp.ne.s32.totalorder %s111, %s112
    %p124 = scmp.eq.s32.totalorder %s18, 1
    %p125 = por %p123, %p124
    %p127 = scmp.ne.s32.totalorder %s112, %s126
    %p128 = scmp.eq.s32.totalorder %s18, 0
    %p129 = por %p127, %p128
    %s130 = ssub.s32 %s12, %s19
    %p131 = scmp.eq.s32.totalorder %s130, 0
    %s133 = sadd.s32 %s132, 1
    %s134 = scalar_select %p131, %s132, %s133
    %p137 = pneg %p131
    %p138 = scmp.eq.s32.totalorder %s12, 1
    %p139 = por %p137, %p138
    %p140 = scmp.ne.s32.totalorder %s132, %s135
    %p141 = scmp.eq.s32.totalorder %s12, 0
    %p142 = por %p140, %p141
    %p143 = scmp.ne.s32.totalorder %s132, %s135
    %p144 = scmp.eq.s32.totalorder %s17, 1
    %p145 = por %p143, %p144
    %p146 = scmp.ne.s32.totalorder %s135, %s136
    %p147 = scmp.eq.s32.totalorder %s17, 0
    %p148 = por %p146, %p147
    %p149 = scmp.ne.s32.totalorder %s135, %s136
    %p150 = scmp.eq.s32.totalorder %s18, 1
    %p151 = por %p149, %p150
    %p153 = scmp.ne.s32.totalorder %s136, %s152
    %p154 = scmp.eq.s32.totalorder %s18, 0
    %p155 = por %p153, %p154
    %p156 = scmp.le.s32.totalorder 1, %s12
    %p157 = scmp.lt.s32.totalorder %s12, 3
    %p158 = pnand %p156, %p157
    %p159 = pneg %p158
    // Predicated region
    $region9: #{conv_bn_prelu.3} parent=5 // pred_check
      _
    $region10: #{conv_bn_prelu.3} parent=5 // pred_check_branch
      %161 = sbr.rel (%p158) target = $region12
    $region11: #{conv_bn_prelu.3} parent=5 // pred_region
      %s162 = ssub.s32 %s12, 1
      // Predicated region
      $region13: #{conv_bn_prelu.3} parent=11 // pred_check
        %p163 = pneg %p59
      $region14: #{conv_bn_prelu.3} parent=11 // pred_check_branch
        %165 = sbr.rel (%p163) target = $region16
      $region15: #{conv_bn_prelu.3} parent=11 // pred_region
        _
      $region16: #{conv_bn_prelu.3} parent=11 // pred_fallthru
        _
      // Predicated region
      $region17: #{conv_bn_prelu.3} parent=11 // pred_check
        %p166 = pneg %p80
      $region18: #{conv_bn_prelu.3} parent=11 // pred_check_branch
        %168 = sbr.rel (%p166) target = $region20
      $region19: #{conv_bn_prelu.3} parent=11 // pred_region
        _
      $region20: #{conv_bn_prelu.3} parent=11 // pred_fallthru
        _
      // Predicated region
      $region21: #{conv_bn_prelu.3} parent=11 // pred_check
        %p169 = pneg %p101
      $region22: #{conv_bn_prelu.3} parent=11 // pred_check_branch
        %171 = sbr.rel (%p169) target = $region24
      $region23: #{conv_bn_prelu.3} parent=11 // pred_region
        _
      $region24: #{conv_bn_prelu.3} parent=11 // pred_fallthru
        _
      // Predicated region
      $region25: #{conv_bn_prelu.3} parent=11 // pred_check
        %p172 = pneg %p122
      $region26: #{conv_bn_prelu.3} parent=11 // pred_check_branch
        %174 = sbr.rel (%p172) target = $region28
      $region27: #{conv_bn_prelu.3} parent=11 // pred_region
        _
      $region28: #{conv_bn_prelu.3} parent=11 // pred_fallthru
        _
    $region12: #{conv_bn_prelu.3} parent=5 // pred_fallthru
      _
    %p175 = scmp.lt.s32.totalorder %s12, 2
    // Predicated region
    $region29: #{conv_bn_prelu.3} parent=5 // pred_check
      %p176 = pneg %p175
    $region30: #{conv_bn_prelu.3} parent=5 // pred_check_branch
      %178 = sbr.rel (%p176) target = $region32
    $region31: #{conv_bn_prelu.3} parent=5 // pred_region
      // Predicated region
      $region33: #{conv_bn_prelu.3} parent=31 // pred_check
        %p179 = pneg %p32
      $region34: #{conv_bn_prelu.3} parent=31 // pred_check_branch
        %181 = sbr.rel (%p179) target = $region36
      $region35: #{conv_bn_prelu.3} parent=31 // pred_region
        %p182 = scmp.lt.s32.totalorder %s12, 1
        %s183 = scalar_select %p182, %s12, 1
        %s184 = smul.addr %s183, 4
        %s185 = smul.addr %s184, 2
        %s186 = scalar_lea.vmem %s0, %s185
      $region36: #{conv_bn_prelu.3} parent=31 // pred_fallthru
        _
    $region32: #{conv_bn_prelu.3} parent=5 // pred_fallthru
      _
    %p187 = scmp.le.s32.totalorder 1, %s12
    %p188 = scmp.lt.s32.totalorder %s12, 3
    %p189 = pnand %p187, %p188
    %p190 = pneg %p189
    // Predicated region
    $region37: #{conv_bn_prelu.3} parent=5 // pred_check
      _
    $region38: #{conv_bn_prelu.3} parent=5 // pred_check_branch
      %192 = sbr.rel (%p189) target = $region40
    $region39: #{conv_bn_prelu.3} parent=5 // pred_region
      %s193 = ssub.s32 %s12, 1
      %p194 = scmp.lt.s32.totalorder %s17, 1
      %s195 = scalar_select %p194, %s17, 1
      %s196 = smul.addr %s195, 4
      %s197 = smul.addr %s196, 2
      %s198 = scalar_lea.vmem %s0, %s197
      %p199 = pneg %p38
      %p200 = pneg %p35
      %p201 = pneg %p59
      %p202 = pneg %p56
      %p203 = pneg %p80
      %p204 = pneg %p77
      %p205 = pneg %p101
      %p206 = pneg %p98
      %p207 = pneg %p122
      %p208 = pneg %p119
      %p209 = pneg %p148
      %p210 = pneg %p145
      %p211 = scmp.lt.s32.totalorder %s17, 1
      %s212 = scalar_select %p211, %s17, 1
      %s213 = smul.addr %s212, 4
      %s214 = smul.addr %s213, 8
      %s215 = scalar_lea.vmem %s5, %s214
      %p216 = scmp.lt.s32.totalorder %s17, 1
      %s217 = scalar_select %p216, %s17, 1
      %s218 = smul.addr %s217, 4
      %s219 = smul.addr %s218, 2
      %s220 = scalar_lea.vmem %s0, %s219
      %p221 = scmp.lt.s32.totalorder %s17, 1
      %s222 = scalar_select %p221, %s17, 1
      %s223 = smul.addr %s222, 4
      %s224 = smul.addr %s223, 8
      %s225 = scalar_lea.vmem %s5, %s224
      %v226 = vld [vmem:[%s220] sm:$0xff]
      %v227 = vunpack.c.l.bf16 %v226
      %v228 = vunpack.c.h.bf16 %v226
      %v229 = vld [vmem:[%s1] sm:$0xff]
      %232 = vst [vmem:[#allocation1] ss:$2 sm:$0xff] %v227
      %s233 = scalar_lea.vmem [#allocation1], 16
      %234 = vst [vmem:[%s233] ss:$2 sm:$0xff] %v228
      %v235 = vld.sshfl [vmem:[#allocation1] sm:$0xff pattern:$0x75316420]
      %v236 = vld.sshfl [vmem:[#allocation1 + $0x8] sm:$0xff pattern:$0x75316420]
      %v237 = vld.sshfl [vmem:[#allocation1 + $0x10] sm:$0xff pattern:$0x75316420]
      %v238 = vld.sshfl [vmem:[#allocation1 + $0x18] sm:$0xff pattern:$0x75316420]
      %243 = vrot.lane.b32.xlu0 %v235, 127
      %v244 = vpop.permute.xlu0 %243
      %245 = vrot.lane.b32.xlu0 %v236, 127
      %v246 = vpop.permute.xlu0 %245
      %247 = vrot.lane.b32.xlu0 %v237, 127
      %v248 = vpop.permute.xlu0 %247
      %249 = vrot.lane.b32.xlu0 %v238, 127
      %v250 = vpop.permute.xlu0 %249
      %v251 = vlaneseq
      %v252 = vand.u32 %v251, 127
      %vm253 = vcmp.lt.s32.totalorder %v252, 127
      %v254 = vsel %vm253, %v248, %v250
      %v255 = vsel %vm253, %v246, %v248
      %v256 = vsel %vm253, %v244, %v246
      %v257 = vsel %vm253, %v250, %v244
      %s258 = scalar_lea.vmem %s1, 8
      %v259 = vld [vmem:[%s258] sm:$0xff]
      %vm260 = vcmask 31744
      %v262 = vsel %vm260, %v259, 0
      %vm264 = vcmask 1043456
      %v266 = vsel %vm264, %v256, 0
      %v269 = vsel %vm264, %v255, 0
      %v272 = vsel %vm264, %v254, 0
      %v275 = vsel %vm264, %v257, 0
      %277 = vmatpush.msra.mxu0 0.0
      %278 = vmatpush.msra.mxu0 0.0
      %279 = vmatpush.msra.mxu0 0.0
      %280 = vmatpush.msra.mxu0 0.0
      %281 = vmatpush.msra.mxu0 0.0
      %282 = vmatpush.msra.mxu0 0.0
      %283 = vmatpush.msra.mxu0 0.0
      %284 = vmatpush.msra.mxu0 0.0
      %285 = vmatpush.msra.mxu0 0.0
      %286 = vmatpush.msra.mxu0 0.0
      %287 = vmatpush.msra.mxu0 0.0
      %288 = vmatpush.msra.mxu0 0.0
      %289 = vmatpush.msra.mxu0 0.0
      %290 = vmatpush.msra.mxu0 0.0
      %291 = vmatpush.msra.mxu0 0.0
      %292 = vmatpush.msra.mxu0 %v266
      %293 = vmatmul.f32.gmra.mxu0 %v262
      %v294 = vpop.f32.mrf.mxu0
      %v295 = vadd.f32 0.0, %v294
      %296 = vdwg.mxu0
      %297 = vmatpush.msra.mxu0 0.0
      %298 = vmatpush.msra.mxu0 0.0
      %299 = vmatpush.msra.mxu0 0.0
      %300 = vmatpush.msra.mxu0 0.0
      %301 = vmatpush.msra.mxu0 0.0
      %302 = vmatpush.msra.mxu0 0.0
      %303 = vmatpush.msra.mxu0 0.0
      %304 = vmatpush.msra.mxu0 0.0
      %305 = vmatpush.msra.mxu0 0.0
      %306 = vmatpush.msra.mxu0 0.0
      %307 = vmatpush.msra.mxu0 0.0
      %308 = vmatpush.msra.mxu0 0.0
      %309 = vmatpush.msra.mxu0 0.0
      %310 = vmatpush.msra.mxu0 0.0
      %311 = vmatpush.msra.mxu0 0.0
      %312 = vmatpush.msra.mxu0 %v269
      %313 = vmatmul.f32.gmra.mxu0 %v262
      %v314 = vpop.f32.mrf.mxu0
      %v315 = vadd.f32 0.0, %v314
      %316 = vdwg.mxu0
      %317 = vmatpush.msra.mxu0 0.0
      %318 = vmatpush.msra.mxu0 0.0
      %319 = vmatpush.msra.mxu0 0.0
      %320 = vmatpush.msra.mxu0 0.0
      %321 = vmatpush.msra.mxu0 0.0
      %322 = vmatpush.msra.mxu0 0.0
      %323 = vmatpush.msra.mxu0 0.0
      %324 = vmatpush.msra.mxu0 0.0
      %325 = vmatpush.msra.mxu0 0.0
      %326 = vmatpush.msra.mxu0 0.0
      %327 = vmatpush.msra.mxu0 0.0
      %328 = vmatpush.msra.mxu0 0.0
      %329 = vmatpush.msra.mxu0 0.0
      %330 = vmatpush.msra.mxu0 0.0
      %331 = vmatpush.msra.mxu0 0.0
      %332 = vmatpush.msra.mxu0 %v272
      %333 = vmatmul.f32.gmra.mxu0 %v262
      %v334 = vpop.f32.mrf.mxu0
      %v335 = vadd.f32 0.0, %v334
      %336 = vdwg.mxu0
      %337 = vmatpush.msra.mxu0 0.0
      %338 = vmatpush.msra.mxu0 0.0
      %339 = vmatpush.msra.mxu0 0.0
      %340 = vmatpush.msra.mxu0 0.0
      %341 = vmatpush.msra.mxu0 0.0
      %342 = vmatpush.msra.mxu0 0.0
      %343 = vmatpush.msra.mxu0 0.0
      %344 = vmatpush.msra.mxu0 0.0
      %345 = vmatpush.msra.mxu0 0.0
      %346 = vmatpush.msra.mxu0 0.0
      %347 = vmatpush.msra.mxu0 0.0
      %348 = vmatpush.msra.mxu0 0.0
      %349 = vmatpush.msra.mxu0 0.0
      %350 = vmatpush.msra.mxu0 0.0
      %351 = vmatpush.msra.mxu0 0.0
      %352 = vmatpush.msra.mxu0 %v275
      %353 = vmatmul.f32.gmra.mxu0 %v262
      %v354 = vpop.f32.mrf.mxu0
      %v355 = vadd.f32 0.0, %v354
      %356 = vdwg.mxu0
      %357 = vst [vmem:[#allocation1] ss:$2 sm:$0xff] %v227
      %s358 = scalar_lea.vmem [#allocation1], 16
      %359 = vst [vmem:[%s358] ss:$2 sm:$0xff] %v228
      %v360 = vld.sshfl [vmem:[#allocation1] sm:$0xff pattern:$0x75316420]
      %v361 = vld.sshfl [vmem:[#allocation1 + $0x8] sm:$0xff pattern:$0x75316420]
      %v362 = vld.sshfl [vmem:[#allocation1 + $0x10] sm:$0xff pattern:$0x75316420]
      %v363 = vld.sshfl [vmem:[#allocation1 + $0x18] sm:$0xff pattern:$0x75316420]
      %v365 = vsel %vm260, %v229, 0
      %v367 = vsel %vm264, %v360, 0
      %v369 = vsel %vm264, %v361, 0
      %v371 = vsel %vm264, %v362, 0
      %v373 = vsel %vm264, %v363, 0
      %375 = vmatpush.msra.mxu0 0.0
      %376 = vmatpush.msra.mxu0 0.0
      %377 = vmatpush.msra.mxu0 0.0
      %378 = vmatpush.msra.mxu0 0.0
      %379 = vmatpush.msra.mxu0 0.0
      %380 = vmatpush.msra.mxu0 0.0
      %381 = vmatpush.msra.mxu0 0.0
      %382 = vmatpush.msra.mxu0 0.0
      %383 = vmatpush.msra.mxu0 0.0
      %384 = vmatpush.msra.mxu0 0.0
      %385 = vmatpush.msra.mxu0 0.0
      %386 = vmatpush.msra.mxu0 0.0
      %387 = vmatpush.msra.mxu0 0.0
      %388 = vmatpush.msra.mxu0 0.0
      %389 = vmatpush.msra.mxu0 0.0
      %390 = vmatpush.msra.mxu0 %v367
      %391 = vmatmul.f32.gmra.mxu0 %v365
      %v392 = vpop.f32.mrf.mxu0
      %v393 = vadd.f32 %v295, %v392
      %394 = vdwg.mxu0
      %395 = vmatpush.msra.mxu0 0.0
      %396 = vmatpush.msra.mxu0 0.0
      %397 = vmatpush.msra.mxu0 0.0
      %398 = vmatpush.msra.mxu0 0.0
      %399 = vmatpush.msra.mxu0 0.0
      %400 = vmatpush.msra.mxu0 0.0
      %401 = vmatpush.msra.mxu0 0.0
      %402 = vmatpush.msra.mxu0 0.0
      %403 = vmatpush.msra.mxu0 0.0
      %404 = vmatpush.msra.mxu0 0.0
      %405 = vmatpush.msra.mxu0 0.0
      %406 = vmatpush.msra.mxu0 0.0
      %407 = vmatpush.msra.mxu0 0.0
      %408 = vmatpush.msra.mxu0 0.0
      %409 = vmatpush.msra.mxu0 0.0
      %410 = vmatpush.msra.mxu0 %v369
      %411 = vmatmul.f32.gmra.mxu0 %v365
      %v412 = vpop.f32.mrf.mxu0
      %v413 = vadd.f32 %v315, %v412
      %414 = vdwg.mxu0
      %415 = vmatpush.msra.mxu0 0.0
      %416 = vmatpush.msra.mxu0 0.0
      %417 = vmatpush.msra.mxu0 0.0
      %418 = vmatpush.msra.mxu0 0.0
      %419 = vmatpush.msra.mxu0 0.0
      %420 = vmatpush.msra.mxu0 0.0
      %421 = vmatpush.msra.mxu0 0.0
      %422 = vmatpush.msra.mxu0 0.0
      %423 = vmatpush.msra.mxu0 0.0
      %424 = vmatpush.msra.mxu0 0.0
      %425 = vmatpush.msra.mxu0 0.0
      %426 = vmatpush.msra.mxu0 0.0
      %427 = vmatpush.msra.mxu0 0.0
      %428 = vmatpush.msra.mxu0 0.0
      %429 = vmatpush.msra.mxu0 0.0
      %430 = vmatpush.msra.mxu0 %v371
      %431 = vmatmul.f32.gmra.mxu0 %v365
      %v432 = vpop.f32.mrf.mxu0
      %v433 = vadd.f32 %v335, %v432
      %434 = vdwg.mxu0
      %435 = vmatpush.msra.mxu0 0.0
      %436 = vmatpush.msra.mxu0 0.0
      %437 = vmatpush.msra.mxu0 0.0
      %438 = vmatpush.msra.mxu0 0.0
      %439 = vmatpush.msra.mxu0 0.0
      %440 = vmatpush.msra.mxu0 0.0
      %441 = vmatpush.msra.mxu0 0.0
      %442 = vmatpush.msra.mxu0 0.0
      %443 = vmatpush.msra.mxu0 0.0
      %444 = vmatpush.msra.mxu0 0.0
      %445 = vmatpush.msra.mxu0 0.0
      %446 = vmatpush.msra.mxu0 0.0
      %447 = vmatpush.msra.mxu0 0.0
      %448 = vmatpush.msra.mxu0 0.0
      %449 = vmatpush.msra.mxu0 0.0
      %450 = vmatpush.msra.mxu0 %v373
      %451 = vmatmul.f32.gmra.mxu0 %v365
      %v452 = vpop.f32.mrf.mxu0
      %v453 = vadd.f32 %v355, %v452
      %454 = vdwg.mxu0
      %455 = vst [vmem:[#allocation1] ss:$2 sm:$0xff] %v227
      %s456 = scalar_lea.vmem [#allocation1], 16
      %457 = vst [vmem:[%s456] ss:$2 sm:$0xff] %v228
      %v458 = vld.sshfl [vmem:[#allocation1] sm:$0xff pattern:$0x75316420]
      %v459 = vld.sshfl [vmem:[#allocation1 + $0x8] sm:$0xff pattern:$0x75316420]
      %v460 = vld.sshfl [vmem:[#allocation1 + $0x10] sm:$0xff pattern:$0x75316420]
      %v461 = vld.sshfl [vmem:[#allocation1 + $0x18] sm:$0xff pattern:$0x75316420]
      %466 = vrot.lane.b32.xlu0 %v458, 126
      %v467 = vpop.permute.xlu0 %466
      %468 = vrot.lane.b32.xlu0 %v459, 126
      %v469 = vpop.permute.xlu0 %468
      %470 = vrot.lane.b32.xlu0 %v460, 126
      %v471 = vpop.permute.xlu0 %470
      %472 = vrot.lane.b32.xlu0 %v461, 126
      %v473 = vpop.permute.xlu0 %472
      %vm474 = vcmp.lt.s32.totalorder %v252, 126
      %v475 = vsel %vm474, %v471, %v473
      %v476 = vsel %vm474, %v469, %v471
      %v477 = vsel %vm474, %v467, %v469
      %v478 = vsel %vm474, %v473, %v467
      %s479 = scalar_lea.vmem %s1, 16
      %v480 = vld [vmem:[%s479] sm:$0xff]
      %v482 = vsel %vm260, %v480, 0
      %v485 = vsel %vm264, %v477, 0
      %v488 = vsel %vm264, %v476, 0
      %v491 = vsel %vm264, %v475, 0
      %v494 = vsel %vm264, %v478, 0
      %496 = vmatpush.msra.mxu0 0.0
      %497 = vmatpush.msra.mxu0 0.0
      %498 = vmatpush.msra.mxu0 0.0
      %499 = vmatpush.msra.mxu0 0.0
      %500 = vmatpush.msra.mxu0 0.0
      %501 = vmatpush.msra.mxu0 0.0
      %502 = vmatpush.msra.mxu0 0.0
      %503 = vmatpush.msra.mxu0 0.0
      %504 = vmatpush.msra.mxu0 0.0
      %505 = vmatpush.msra.mxu0 0.0
      %506 = vmatpush.msra.mxu0 0.0
      %507 = vmatpush.msra.mxu0 0.0
      %508 = vmatpush.msra.mxu0 0.0
      %509 = vmatpush.msra.mxu0 0.0
      %510 = vmatpush.msra.mxu0 0.0
      %511 = vmatpush.msra.mxu0 %v485
      %512 = vmatmul.f32.gmra.mxu0 %v482
      %v513 = vpop.f32.mrf.mxu0
      %v514 = vadd.f32 0.0, %v513
      %515 = vdwg.mxu0
      %516 = vmatpush.msra.mxu0 0.0
      %517 = vmatpush.msra.mxu0 0.0
      %518 = vmatpush.msra.mxu0 0.0
      %519 = vmatpush.msra.mxu0 0.0
      %520 = vmatpush.msra.mxu0 0.0
      %521 = vmatpush.msra.mxu0 0.0
      %522 = vmatpush.msra.mxu0 0.0
      %523 = vmatpush.msra.mxu0 0.0
      %524 = vmatpush.msra.mxu0 0.0
      %525 = vmatpush.msra.mxu0 0.0
      %526 = vmatpush.msra.mxu0 0.0
      %527 = vmatpush.msra.mxu0 0.0
      %528 = vmatpush.msra.mxu0 0.0
      %529 = vmatpush.msra.mxu0 0.0
      %530 = vmatpush.msra.mxu0 0.0
      %531 = vmatpush.msra.mxu0 %v488
      %532 = vmatmul.f32.gmra.mxu0 %v482
      %v533 = vpop.f32.mrf.mxu0
      %v534 = vadd.f32 0.0, %v533
      %535 = vdwg.mxu0
      %536 = vmatpush.msra.mxu0 0.0
      %537 = vmatpush.msra.mxu0 0.0
      %538 = vmatpush.msra.mxu0 0.0
      %539 = vmatpush.msra.mxu0 0.0
      %540 = vmatpush.msra.mxu0 0.0
      %541 = vmatpush.msra.mxu0 0.0
      %542 = vmatpush.msra.mxu0 0.0
      %543 = vmatpush.msra.mxu0 0.0
      %544 = vmatpush.msra.mxu0 0.0
      %545 = vmatpush.msra.mxu0 0.0
      %546 = vmatpush.msra.mxu0 0.0
      %547 = vmatpush.msra.mxu0 0.0
      %548 = vmatpush.msra.mxu0 0.0
      %549 = vmatpush.msra.mxu0 0.0
      %550 = vmatpush.msra.mxu0 0.0
      %551 = vmatpush.msra.mxu0 %v491
      %552 = vmatmul.f32.gmra.mxu0 %v482
      %v553 = vpop.f32.mrf.mxu0
      %v554 = vadd.f32 0.0, %v553
      %555 = vdwg.mxu0
      %556 = vmatpush.msra.mxu0 0.0
      %557 = vmatpush.msra.mxu0 0.0
      %558 = vmatpush.msra.mxu0 0.0
      %559 = vmatpush.msra.mxu0 0.0
      %560 = vmatpush.msra.mxu0 0.0
      %561 = vmatpush.msra.mxu0 0.0
      %562 = vmatpush.msra.mxu0 0.0
      %563 = vmatpush.msra.mxu0 0.0
      %564 = vmatpush.msra.mxu0 0.0
      %565 = vmatpush.msra.mxu0 0.0
      %566 = vmatpush.msra.mxu0 0.0
      %567 = vmatpush.msra.mxu0 0.0
      %568 = vmatpush.msra.mxu0 0.0
      %569 = vmatpush.msra.mxu0 0.0
      %570 = vmatpush.msra.mxu0 0.0
      %571 = vmatpush.msra.mxu0 %v494
      %572 = vmatmul.f32.gmra.mxu0 %v482
      %v573 = vpop.f32.mrf.mxu0
      %v574 = vadd.f32 0.0, %v573
      %575 = vdwg.mxu0
      %v576 = vadd.f32 %v393, %v514
      %v577 = vadd.f32 %v413, %v534
      %v578 = vadd.f32 %v433, %v554
      %v579 = vadd.f32 %v453, %v574
      %580 = vst [vmem:[#allocation1] ss:$2 sm:$0xff] %v227
      %s581 = scalar_lea.vmem [#allocation1], 16
      %582 = vst [vmem:[%s581] ss:$2 sm:$0xff] %v228
      %v583 = vld.sshfl [vmem:[#allocation1] sm:$0xff pattern:$0x75316420]
      %v584 = vld.sshfl [vmem:[#allocation1 + $0x8] sm:$0xff pattern:$0x75316420]
      %v585 = vld.sshfl [vmem:[#allocation1 + $0x10] sm:$0xff pattern:$0x75316420]
      %v586 = vld.sshfl [vmem:[#allocation1 + $0x18] sm:$0xff pattern:$0x75316420]
      %591 = vrot.lane.b32.xlu0 %v583, 110
      %v592 = vpop.permute.xlu0 %591
      %593 = vrot.lane.b32.xlu0 %v584, 110
      %v594 = vpop.permute.xlu0 %593
      %595 = vrot.lane.b32.xlu0 %v585, 110
      %v596 = vpop.permute.xlu0 %595
      %597 = vrot.lane.b32.xlu0 %v586, 110
      %v598 = vpop.permute.xlu0 %597
      %vm599 = vcmp.lt.s32.totalorder %v252, 110
      %v600 = vsel %vm599, %v596, %v598
      %v601 = vsel %vm599, %v594, %v596
      %v602 = vsel %vm599, %v592, %v594
      %v603 = vsel %vm599, %v598, %v592
      %s604 = scalar_lea.vmem %s1, 24
      %v605 = vld [vmem:[%s604] sm:$0xff]
      %v607 = vsel %vm260, %v605, 0
      %v610 = vsel %vm264, %v602, 0
      %v613 = vsel %vm264, %v601, 0
      %v616 = vsel %vm264, %v600, 0
      %v619 = vsel %vm264, %v603, 0
      %621 = vmatpush.msra.mxu0 0.0
      %622 = vmatpush.msra.mxu0 0.0
      %623 = vmatpush.msra.mxu0 0.0
      %624 = vmatpush.msra.mxu0 0.0
      %625 = vmatpush.msra.mxu0 0.0
      %626 = vmatpush.msra.mxu0 0.0
      %627 = vmatpush.msra.mxu0 0.0
      %628 = vmatpush.msra.mxu0 0.0
      %629 = vmatpush.msra.mxu0 0.0
      %630 = vmatpush.msra.mxu0 0.0
      %631 = vmatpush.msra.mxu0 0.0
      %632 = vmatpush.msra.mxu0 0.0
      %633 = vmatpush.msra.mxu0 0.0
      %634 = vmatpush.msra.mxu0 0.0
      %635 = vmatpush.msra.mxu0 0.0
      %636 = vmatpush.msra.mxu0 %v610
      %637 = vmatmul.f32.gmra.mxu0 %v607
      %v638 = vpop.f32.mrf.mxu0
      %v639 = vadd.f32 0.0, %v638
      %640 = vdwg.mxu0
      %641 = vmatpush.msra.mxu0 0.0
      %642 = vmatpush.msra.mxu0 0.0
      %643 = vmatpush.msra.mxu0 0.0
      %644 = vmatpush.msra.mxu0 0.0
      %645 = vmatpush.msra.mxu0 0.0
      %646 = vmatpush.msra.mxu0 0.0
      %647 = vmatpush.msra.mxu0 0.0
      %648 = vmatpush.msra.mxu0 0.0
      %649 = vmatpush.msra.mxu0 0.0
      %650 = vmatpush.msra.mxu0 0.0
      %651 = vmatpush.msra.mxu0 0.0
      %652 = vmatpush.msra.mxu0 0.0
      %653 = vmatpush.msra.mxu0 0.0
      %654 = vmatpush.msra.mxu0 0.0
      %655 = vmatpush.msra.mxu0 0.0
      %656 = vmatpush.msra.mxu0 %v613
      %657 = vmatmul.f32.gmra.mxu0 %v607
      %v658 = vpop.f32.mrf.mxu0
      %v659 = vadd.f32 0.0, %v658
      %660 = vdwg.mxu0
      %661 = vmatpush.msra.mxu0 0.0
      %662 = vmatpush.msra.mxu0 0.0
      %663 = vmatpush.msra.mxu0 0.0
      %664 = vmatpush.msra.mxu0 0.0
      %665 = vmatpush.msra.mxu0 0.0
      %666 = vmatpush.msra.mxu0 0.0
      %667 = vmatpush.msra.mxu0 0.0
      %668 = vmatpush.msra.mxu0 0.0
      %669 = vmatpush.msra.mxu0 0.0
      %670 = vmatpush.msra.mxu0 0.0
      %671 = vmatpush.msra.mxu0 0.0
      %672 = vmatpush.msra.mxu0 0.0
      %673 = vmatpush.msra.mxu0 0.0
      %674 = vmatpush.msra.mxu0 0.0
      %675 = vmatpush.msra.mxu0 0.0
      %676 = vmatpush.msra.mxu0 %v616
      %677 = vmatmul.f32.gmra.mxu0 %v607
      %v678 = vpop.f32.mrf.mxu0
      %v679 = vadd.f32 0.0, %v678
      %680 = vdwg.mxu0
      %681 = vmatpush.msra.mxu0 0.0
      %682 = vmatpush.msra.mxu0 0.0
      %683 = vmatpush.msra.mxu0 0.0
      %684 = vmatpush.msra.mxu0 0.0
      %685 = vmatpush.msra.mxu0 0.0
      %686 = vmatpush.msra.mxu0 0.0
      %687 = vmatpush.msra.mxu0 0.0
      %688 = vmatpush.msra.mxu0 0.0
      %689 = vmatpush.msra.mxu0 0.0
      %690 = vmatpush.msra.mxu0 0.0
      %691 = vmatpush.msra.mxu0 0.0
      %692 = vmatpush.msra.mxu0 0.0
      %693 = vmatpush.msra.mxu0 0.0
      %694 = vmatpush.msra.mxu0 0.0
      %695 = vmatpush.msra.mxu0 0.0
      %696 = vmatpush.msra.mxu0 %v619
      %697 = vmatmul.f32.gmra.mxu0 %v607
      %v698 = vpop.f32.mrf.mxu0
      %v699 = vadd.f32 0.0, %v698
      %700 = vdwg.mxu0
      %v701 = vadd.f32 %v576, %v639
      %v702 = vadd.f32 %v577, %v659
      %v703 = vadd.f32 %v578, %v679
      %v704 = vadd.f32 %v579, %v699
      %705 = vst [vmem:[#allocation1] ss:$2 sm:$0xff] %v227
      %s706 = scalar_lea.vmem [#allocation1], 16
      %707 = vst [vmem:[%s706] ss:$2 sm:$0xff] %v228
      %v708 = vld.sshfl [vmem:[#allocation1] sm:$0xff pattern:$0x75316420]
      %v709 = vld.sshfl [vmem:[#allocation1 + $0x8] sm:$0xff pattern:$0x75316420]
      %v710 = vld.sshfl [vmem:[#allocation1 + $0x10] sm:$0xff pattern:$0x75316420]
      %v711 = vld.sshfl [vmem:[#allocation1 + $0x18] sm:$0xff pattern:$0x75316420]
      %716 = vrot.lane.b32.xlu0 %v708, 109
      %v717 = vpop.permute.xlu0 %716
      %718 = vrot.lane.b32.xlu0 %v709, 109
      %v719 = vpop.permute.xlu0 %718
      %720 = vrot.lane.b32.xlu0 %v710, 109
      %v721 = vpop.permute.xlu0 %720
      %722 = vrot.lane.b32.xlu0 %v711, 109
      %v723 = vpop.permute.xlu0 %722
      %vm724 = vcmp.lt.s32.totalorder %v252, 109
      %v725 = vsel %vm724, %v721, %v723
      %v726 = vsel %vm724, %v719, %v721
      %v727 = vsel %vm724, %v717, %v719
      %v728 = vsel %vm724, %v723, %v717
      %s729 = scalar_lea.vmem %s1, 32
      %v730 = vld [vmem:[%s729] sm:$0xff]
      %v732 = vsel %vm260, %v730, 0
      %v735 = vsel %vm264, %v727, 0
      %v738 = vsel %vm264, %v726, 0
      %v741 = vsel %vm264, %v725, 0
      %v744 = vsel %vm264, %v728, 0
      %746 = vmatpush.msra.mxu0 0.0
      %747 = vmatpush.msra.mxu0 0.0
      %748 = vmatpush.msra.mxu0 0.0
      %749 = vmatpush.msra.mxu0 0.0
      %750 = vmatpush.msra.mxu0 0.0
      %751 = vmatpush.msra.mxu0 0.0
      %752 = vmatpush.msra.mxu0 0.0
      %753 = vmatpush.msra.mxu0 0.0
      %754 = vmatpush.msra.mxu0 0.0
      %755 = vmatpush.msra.mxu0 0.0
      %756 = vmatpush.msra.mxu0 0.0
      %757 = vmatpush.msra.mxu0 0.0
      %758 = vmatpush.msra.mxu0 0.0
      %759 = vmatpush.msra.mxu0 0.0
      %760 = vmatpush.msra.mxu0 0.0
      %761 = vmatpush.msra.mxu0 %v735
      %762 = vmatmul.f32.gmra.mxu0 %v732
      %v763 = vpop.f32.mrf.mxu0
      %v764 = vadd.f32 0.0, %v763
      %765 = vdwg.mxu0
      %766 = vmatpush.msra.mxu0 0.0
      %767 = vmatpush.msra.mxu0 0.0
      %768 = vmatpush.msra.mxu0 0.0
      %769 = vmatpush.msra.mxu0 0.0
      %770 = vmatpush.msra.mxu0 0.0
      %771 = vmatpush.msra.mxu0 0.0
      %772 = vmatpush.msra.mxu0 0.0
      %773 = vmatpush.msra.mxu0 0.0
      %774 = vmatpush.msra.mxu0 0.0
      %775 = vmatpush.msra.mxu0 0.0
      %776 = vmatpush.msra.mxu0 0.0
      %777 = vmatpush.msra.mxu0 0.0
      %778 = vmatpush.msra.mxu0 0.0
      %779 = vmatpush.msra.mxu0 0.0
      %780 = vmatpush.msra.mxu0 0.0
      %781 = vmatpush.msra.mxu0 %v738
      %782 = vmatmul.f32.gmra.mxu0 %v732
      %v783 = vpop.f32.mrf.mxu0
      %v784 = vadd.f32 0.0, %v783
      %785 = vdwg.mxu0
      %786 = vmatpush.msra.mxu0 0.0
      %787 = vmatpush.msra.mxu0 0.0
      %788 = vmatpush.msra.mxu0 0.0
      %789 = vmatpush.msra.mxu0 0.0
      %790 = vmatpush.msra.mxu0 0.0
      %791 = vmatpush.msra.mxu0 0.0
      %792 = vmatpush.msra.mxu0 0.0
      %793 = vmatpush.msra.mxu0 0.0
      %794 = vmatpush.msra.mxu0 0.0
      %795 = vmatpush.msra.mxu0 0.0
      %796 = vmatpush.msra.mxu0 0.0
      %797 = vmatpush.msra.mxu0 0.0
      %798 = vmatpush.msra.mxu0 0.0
      %799 = vmatpush.msra.mxu0 0.0
      %800 = vmatpush.msra.mxu0 0.0
      %801 = vmatpush.msra.mxu0 %v741
      %802 = vmatmul.f32.gmra.mxu0 %v732
      %v803 = vpop.f32.mrf.mxu0
      %v804 = vadd.f32 0.0, %v803
      %805 = vdwg.mxu0
      %806 = vmatpush.msra.mxu0 0.0
      %807 = vmatpush.msra.mxu0 0.0
      %808 = vmatpush.msra.mxu0 0.0
      %809 = vmatpush.msra.mxu0 0.0
      %810 = vmatpush.msra.mxu0 0.0
      %811 = vmatpush.msra.mxu0 0.0
      %812 = vmatpush.msra.mxu0 0.0
      %813 = vmatpush.msra.mxu0 0.0
      %814 = vmatpush.msra.mxu0 0.0
      %815 = vmatpush.msra.mxu0 0.0
      %816 = vmatpush.msra.mxu0 0.0
      %817 = vmatpush.msra.mxu0 0.0
      %818 = vmatpush.msra.mxu0 0.0
      %819 = vmatpush.msra.mxu0 0.0
      %820 = vmatpush.msra.mxu0 0.0
      %821 = vmatpush.msra.mxu0 %v744
      %822 = vmatmul.f32.gmra.mxu0 %v732
      %v823 = vpop.f32.mrf.mxu0
      %v824 = vadd.f32 0.0, %v823
      %825 = vdwg.mxu0
      %v826 = vadd.f32 %v701, %v764
      %v827 = vadd.f32 %v702, %v784
      %v828 = vadd.f32 %v703, %v804
      %v829 = vadd.f32 %v704, %v824
      %830 = vst [vmem:[#allocation1] ss:$2 sm:$0xff] %v227
      %s831 = scalar_lea.vmem [#allocation1], 16
      %832 = vst [vmem:[%s831] ss:$2 sm:$0xff] %v228
      %v833 = vld.sshfl [vmem:[#allocation1] sm:$0xff pattern:$0x75316420]
      %v834 = vld.sshfl [vmem:[#allocation1 + $0x8] sm:$0xff pattern:$0x75316420]
      %v835 = vld.sshfl [vmem:[#allocation1 + $0x10] sm:$0xff pattern:$0x75316420]
      %v836 = vld.sshfl [vmem:[#allocation1 + $0x18] sm:$0xff pattern:$0x75316420]
      %841 = vrot.lane.b32.xlu0 %v833, 108
      %v842 = vpop.permute.xlu0 %841
      %843 = vrot.lane.b32.xlu0 %v834, 108
      %v844 = vpop.permute.xlu0 %843
      %845 = vrot.lane.b32.xlu0 %v835, 108
      %v846 = vpop.permute.xlu0 %845
      %847 = vrot.lane.b32.xlu0 %v836, 108
      %v848 = vpop.permute.xlu0 %847
      %vm849 = vcmp.lt.s32.totalorder %v252, 108
      %v850 = vsel %vm849, %v846, %v848
      %v851 = vsel %vm849, %v844, %v846
      %v852 = vsel %vm849, %v842, %v844
      %v853 = vsel %vm849, %v848, %v842
      %s854 = scalar_lea.vmem %s1, 40
      %v855 = vld [vmem:[%s854] sm:$0xff]
      %v857 = vsel %vm260, %v855, 0
      %v860 = vsel %vm264, %v852, 0
      %v863 = vsel %vm264, %v851, 0
      %v866 = vsel %vm264, %v850, 0
      %v869 = vsel %vm264, %v853, 0
      %871 = vmatpush.msra.mxu0 0.0
      %872 = vmatpush.msra.mxu0 0.0
      %873 = vmatpush.msra.mxu0 0.0
      %874 = vmatpush.msra.mxu0 0.0
      %875 = vmatpush.msra.mxu0 0.0
      %876 = vmatpush.msra.mxu0 0.0
      %877 = vmatpush.msra.mxu0 0.0
      %878 = vmatpush.msra.mxu0 0.0
      %879 = vmatpush.msra.mxu0 0.0
      %880 = vmatpush.msra.mxu0 0.0
      %881 = vmatpush.msra.mxu0 0.0
      %882 = vmatpush.msra.mxu0 0.0
      %883 = vmatpush.msra.mxu0 0.0
      %884 = vmatpush.msra.mxu0 0.0
      %885 = vmatpush.msra.mxu0 0.0
      %886 = vmatpush.msra.mxu0 %v860
      %887 = vmatmul.f32.gmra.mxu0 %v857
      %v888 = vpop.f32.mrf.mxu0
      %v889 = vadd.f32 0.0, %v888
      %890 = vdwg.mxu0
      %891 = vmatpush.msra.mxu0 0.0
      %892 = vmatpush.msra.mxu0 0.0
      %893 = vmatpush.msra.mxu0 0.0
      %894 = vmatpush.msra.mxu0 0.0
      %895 = vmatpush.msra.mxu0 0.0
      %896 = vmatpush.msra.mxu0 0.0
      %897 = vmatpush.msra.mxu0 0.0
      %898 = vmatpush.msra.mxu0 0.0
      %899 = vmatpush.msra.mxu0 0.0
      %900 = vmatpush.msra.mxu0 0.0
      %901 = vmatpush.msra.mxu0 0.0
      %902 = vmatpush.msra.mxu0 0.0
      %903 = vmatpush.msra.mxu0 0.0
      %904 = vmatpush.msra.mxu0 0.0
      %905 = vmatpush.msra.mxu0 0.0
      %906 = vmatpush.msra.mxu0 %v863
      %907 = vmatmul.f32.gmra.mxu0 %v857
      %v908 = vpop.f32.mrf.mxu0
      %v909 = vadd.f32 0.0, %v908
      %910 = vdwg.mxu0
      %911 = vmatpush.msra.mxu0 0.0
      %912 = vmatpush.msra.mxu0 0.0
      %913 = vmatpush.msra.mxu0 0.0
      %914 = vmatpush.msra.mxu0 0.0
      %915 = vmatpush.msra.mxu0 0.0
      %916 = vmatpush.msra.mxu0 0.0
      %917 = vmatpush.msra.mxu0 0.0
      %918 = vmatpush.msra.mxu0 0.0
      %919 = vmatpush.msra.mxu0 0.0
      %920 = vmatpush.msra.mxu0 0.0
      %921 = vmatpush.msra.mxu0 0.0
      %922 = vmatpush.msra.mxu0 0.0
      %923 = vmatpush.msra.mxu0 0.0
      %924 = vmatpush.msra.mxu0 0.0
      %925 = vmatpush.msra.mxu0 0.0
      %926 = vmatpush.msra.mxu0 %v866
      %927 = vmatmul.f32.gmra.mxu0 %v857
      %v928 = vpop.f32.mrf.mxu0
      %v929 = vadd.f32 0.0, %v928
      %930 = vdwg.mxu0
      %931 = vmatpush.msra.mxu0 0.0
      %932 = vmatpush.msra.mxu0 0.0
      %933 = vmatpush.msra.mxu0 0.0
      %934 = vmatpush.msra.mxu0 0.0
      %935 = vmatpush.msra.mxu0 0.0
      %936 = vmatpush.msra.mxu0 0.0
      %937 = vmatpush.msra.mxu0 0.0
      %938 = vmatpush.msra.mxu0 0.0
      %939 = vmatpush.msra.mxu0 0.0
      %940 = vmatpush.msra.mxu0 0.0
      %941 = vmatpush.msra.mxu0 0.0
      %942 = vmatpush.msra.mxu0 0.0
      %943 = vmatpush.msra.mxu0 0.0
      %944 = vmatpush.msra.mxu0 0.0
      %945 = vmatpush.msra.mxu0 0.0
      %946 = vmatpush.msra.mxu0 %v869
      %947 = vmatmul.f32.gmra.mxu0 %v857
      %v948 = vpop.f32.mrf.mxu0
      %v949 = vadd.f32 0.0, %v948
      %950 = vdwg.mxu0
      %v951 = vadd.f32 %v826, %v889
      %v952 = vadd.f32 %v827, %v909
      %v953 = vadd.f32 %v828, %v929
      %v954 = vadd.f32 %v829, %v949
      %955 = vst [vmem:[#allocation1] ss:$2 sm:$0xff] %v227
      %s956 = scalar_lea.vmem [#allocation1], 16
      %957 = vst [vmem:[%s956] ss:$2 sm:$0xff] %v228
      %v958 = vld.sshfl [vmem:[#allocation1] sm:$0xff pattern:$0x75316420]
      %v959 = vld.sshfl [vmem:[#allocation1 + $0x8] sm:$0xff pattern:$0x75316420]
      %v960 = vld.sshfl [vmem:[#allocation1 + $0x10] sm:$0xff pattern:$0x75316420]
      %v961 = vld.sshfl [vmem:[#allocation1 + $0x18] sm:$0xff pattern:$0x75316420]
      %966 = vrot.lane.b32.xlu0 %v958, 92
      %v967 = vpop.permute.xlu0 %966
      %968 = vrot.lane.b32.xlu0 %v959, 92
      %v969 = vpop.permute.xlu0 %968
      %970 = vrot.lane.b32.xlu0 %v960, 92
      %v971 = vpop.permute.xlu0 %970
      %972 = vrot.lane.b32.xlu0 %v961, 92
      %v973 = vpop.permute.xlu0 %972
      %vm974 = vcmp.lt.s32.totalorder %v252, 92
      %v975 = vsel %vm974, %v971, %v973
      %v976 = vsel %vm974, %v969, %v971
      %v977 = vsel %vm974, %v967, %v969
      %v978 = vsel %vm974, %v973, %v967
      %s979 = scalar_lea.vmem %s1, 48
      %v980 = vld [vmem:[%s979] sm:$0xff]
      %v982 = vsel %vm260, %v980, 0
      %v985 = vsel %vm264, %v977, 0
      %v988 = vsel %vm264, %v976, 0
      %v991 = vsel %vm264, %v975, 0
      %v994 = vsel %vm264, %v978, 0
      %996 = vmatpush.msra.mxu0 0.0
      %997 = vmatpush.msra.mxu0 0.0
      %998 = vmatpush.msra.mxu0 0.0
      %999 = vmatpush.msra.mxu0 0.0
      %1000 = vmatpush.msra.mxu0 0.0
      %1001 = vmatpush.msra.mxu0 0.0
      %1002 = vmatpush.msra.mxu0 0.0
      %1003 = vmatpush.msra.mxu0 0.0
      %1004 = vmatpush.msra.mxu0 0.0
      %1005 = vmatpush.msra.mxu0 0.0
      %1006 = vmatpush.msra.mxu0 0.0
      %1007 = vmatpush.msra.mxu0 0.0
      %1008 = vmatpush.msra.mxu0 0.0
      %1009 = vmatpush.msra.mxu0 0.0
      %1010 = vmatpush.msra.mxu0 0.0
      %1011 = vmatpush.msra.mxu0 %v985
      %1012 = vmatmul.f32.gmra.mxu0 %v982
      %v1013 = vpop.f32.mrf.mxu0
      %v1014 = vadd.f32 0.0, %v1013
      %1015 = vdwg.mxu0
      %1016 = vmatpush.msra.mxu0 0.0
      %1017 = vmatpush.msra.mxu0 0.0
      %1018 = vmatpush.msra.mxu0 0.0
      %1019 = vmatpush.msra.mxu0 0.0
      %1020 = vmatpush.msra.mxu0 0.0
      %1021 = vmatpush.msra.mxu0 0.0
      %1022 = vmatpush.msra.mxu0 0.0
      %1023 = vmatpush.msra.mxu0 0.0
      %1024 = vmatpush.msra.mxu0 0.0
      %1025 = vmatpush.msra.mxu0 0.0
      %1026 = vmatpush.msra.mxu0 0.0
      %1027 = vmatpush.msra.mxu0 0.0
      %1028 = vmatpush.msra.mxu0 0.0
      %1029 = vmatpush.msra.mxu0 0.0
      %1030 = vmatpush.msra.mxu0 0.0
      %1031 = vmatpush.msra.mxu0 %v988
      %1032 = vmatmul.f32.gmra.mxu0 %v982
      %v1033 = vpop.f32.mrf.mxu0
      %v1034 = vadd.f32 0.0, %v1033
      %1035 = vdwg.mxu0
      %1036 = vmatpush.msra.mxu0 0.0
      %1037 = vmatpush.msra.mxu0 0.0
      %1038 = vmatpush.msra.mxu0 0.0
      %1039 = vmatpush.msra.mxu0 0.0
      %1040 = vmatpush.msra.mxu0 0.0
      %1041 = vmatpush.msra.mxu0 0.0
      %1042 = vmatpush.msra.mxu0 0.0
      %1043 = vmatpush.msra.mxu0 0.0
      %1044 = vmatpush.msra.mxu0 0.0
      %1045 = vmatpush.msra.mxu0 0.0
      %1046 = vmatpush.msra.mxu0 0.0
      %1047 = vmatpush.msra.mxu0 0.0
      %1048 = vmatpush.msra.mxu0 0.0
      %1049 = vmatpush.msra.mxu0 0.0
      %1050 = vmatpush.msra.mxu0 0.0
      %1051 = vmatpush.msra.mxu0 %v991
      %1052 = vmatmul.f32.gmra.mxu0 %v982
      %v1053 = vpop.f32.mrf.mxu0
      %v1054 = vadd.f32 0.0, %v1053
      %1055 = vdwg.mxu0
      %1056 = vmatpush.msra.mxu0 0.0
      %1057 = vmatpush.msra.mxu0 0.0
      %1058 = vmatpush.msra.mxu0 0.0
      %1059 = vmatpush.msra.mxu0 0.0
      %1060 = vmatpush.msra.mxu0 0.0
      %1061 = vmatpush.msra.mxu0 0.0
      %1062 = vmatpush.msra.mxu0 0.0
      %1063 = vmatpush.msra.mxu0 0.0
      %1064 = vmatpush.msra.mxu0 0.0
      %1065 = vmatpush.msra.mxu0 0.0
      %1066 = vmatpush.msra.mxu0 0.0
      %1067 = vmatpush.msra.mxu0 0.0
      %1068 = vmatpush.msra.mxu0 0.0
      %1069 = vmatpush.msra.mxu0 0.0
      %1070 = vmatpush.msra.mxu0 0.0
      %1071 = vmatpush.msra.mxu0 %v994
      %1072 = vmatmul.f32.gmra.mxu0 %v982
      %v1073 = vpop.f32.mrf.mxu0
      %v1074 = vadd.f32 0.0, %v1073
      %1075 = vdwg.mxu0
      %v1076 = vadd.f32 %v951, %v1014
      %v1077 = vadd.f32 %v952, %v1034
      %v1078 = vadd.f32 %v953, %v1054
      %v1079 = vadd.f32 %v954, %v1074
      %1080 = vst [vmem:[#allocation1] ss:$2 sm:$0xff] %v227
      %s1081 = scalar_lea.vmem [#allocation1], 16
      %1082 = vst [vmem:[%s1081] ss:$2 sm:$0xff] %v228
      %v1083 = vld.sshfl [vmem:[#allocation1] sm:$0xff pattern:$0x75316420]
      %v1084 = vld.sshfl [vmem:[#allocation1 + $0x8] sm:$0xff pattern:$0x75316420]
      %v1085 = vld.sshfl [vmem:[#allocation1 + $0x10] sm:$0xff pattern:$0x75316420]
      %v1086 = vld.sshfl [vmem:[#allocation1 + $0x18] sm:$0xff pattern:$0x75316420]
      %1091 = vrot.lane.b32.xlu0 %v1083, 91
      %v1092 = vpop.permute.xlu0 %1091
      %1093 = vrot.lane.b32.xlu0 %v1084, 91
      %v1094 = vpop.permute.xlu0 %1093
      %1095 = vrot.lane.b32.xlu0 %v1085, 91
      %v1096 = vpop.permute.xlu0 %1095
      %1097 = vrot.lane.b32.xlu0 %v1086, 91
      %v1098 = vpop.permute.xlu0 %1097
      %vm1099 = vcmp.lt.s32.totalorder %v252, 91
      %v1100 = vsel %vm1099, %v1096, %v1098
      %v1101 = vsel %vm1099, %v1094, %v1096
      %v1102 = vsel %vm1099, %v1092, %v1094
      %v1103 = vsel %vm1099, %v1098, %v1092
      %s1104 = scalar_lea.vmem %s1, 56
      %v1105 = vld [vmem:[%s1104] sm:$0xff]
      %v1107 = vsel %vm260, %v1105, 0
      %v1110 = vsel %vm264, %v1102, 0
      %v1113 = vsel %vm264, %v1101, 0
      %v1116 = vsel %vm264, %v1100, 0
      %v1119 = vsel %vm264, %v1103, 0
      %1121 = vmatpush.msra.mxu0 0.0
      %1122 = vmatpush.msra.mxu0 0.0
      %1123 = vmatpush.msra.mxu0 0.0
      %1124 = vmatpush.msra.mxu0 0.0
      %1125 = vmatpush.msra.mxu0 0.0
      %1126 = vmatpush.msra.mxu0 0.0
      %1127 = vmatpush.msra.mxu0 0.0
      %1128 = vmatpush.msra.mxu0 0.0
      %1129 = vmatpush.msra.mxu0 0.0
      %1130 = vmatpush.msra.mxu0 0.0
      %1131 = vmatpush.msra.mxu0 0.0
      %1132 = vmatpush.msra.mxu0 0.0
      %1133 = vmatpush.msra.mxu0 0.0
      %1134 = vmatpush.msra.mxu0 0.0
      %1135 = vmatpush.msra.mxu0 0.0
      %1136 = vmatpush.msra.mxu0 %v1110
      %1137 = vmatmul.f32.gmra.mxu0 %v1107
      %v1138 = vpop.f32.mrf.mxu0
      %v1139 = vadd.f32 0.0, %v1138
      %1140 = vdwg.mxu0
      %1141 = vmatpush.msra.mxu0 0.0
      %1142 = vmatpush.msra.mxu0 0.0
      %1143 = vmatpush.msra.mxu0 0.0
      %1144 = vmatpush.msra.mxu0 0.0
      %1145 = vmatpush.msra.mxu0 0.0
      %1146 = vmatpush.msra.mxu0 0.0
      %1147 = vmatpush.msra.mxu0 0.0
      %1148 = vmatpush.msra.mxu0 0.0
      %1149 = vmatpush.msra.mxu0 0.0
      %1150 = vmatpush.msra.mxu0 0.0
      %1151 = vmatpush.msra.mxu0 0.0
      %1152 = vmatpush.msra.mxu0 0.0
      %1153 = vmatpush.msra.mxu0 0.0
      %1154 = vmatpush.msra.mxu0 0.0
      %1155 = vmatpush.msra.mxu0 0.0
      %1156 = vmatpush.msra.mxu0 %v1113
      %1157 = vmatmul.f32.gmra.mxu0 %v1107
      %v1158 = vpop.f32.mrf.mxu0
      %v1159 = vadd.f32 0.0, %v1158
      %1160 = vdwg.mxu0
      %1161 = vmatpush.msra.mxu0 0.0
      %1162 = vmatpush.msra.mxu0 0.0
      %1163 = vmatpush.msra.mxu0 0.0
      %1164 = vmatpush.msra.mxu0 0.0
      %1165 = vmatpush.msra.mxu0 0.0
      %1166 = vmatpush.msra.mxu0 0.0
      %1167 = vmatpush.msra.mxu0 0.0
      %1168 = vmatpush.msra.mxu0 0.0
      %1169 = vmatpush.msra.mxu0 0.0
      %1170 = vmatpush.msra.mxu0 0.0
      %1171 = vmatpush.msra.mxu0 0.0
      %1172 = vmatpush.msra.mxu0 0.0
      %1173 = vmatpush.msra.mxu0 0.0
      %1174 = vmatpush.msra.mxu0 0.0
      %1175 = vmatpush.msra.mxu0 0.0
      %1176 = vmatpush.msra.mxu0 %v1116
      %1177 = vmatmul.f32.gmra.mxu0 %v1107
      %v1178 = vpop.f32.mrf.mxu0
      %v1179 = vadd.f32 0.0, %v1178
      %1180 = vdwg.mxu0
      %1181 = vmatpush.msra.mxu0 0.0
      %1182 = vmatpush.msra.mxu0 0.0
      %1183 = vmatpush.msra.mxu0 0.0
      %1184 = vmatpush.msra.mxu0 0.0
      %1185 = vmatpush.msra.mxu0 0.0
      %1186 = vmatpush.msra.mxu0 0.0
      %1187 = vmatpush.msra.mxu0 0.0
      %1188 = vmatpush.msra.mxu0 0.0
      %1189 = vmatpush.msra.mxu0 0.0
      %1190 = vmatpush.msra.mxu0 0.0
      %1191 = vmatpush.msra.mxu0 0.0
      %1192 = vmatpush.msra.mxu0 0.0
      %1193 = vmatpush.msra.mxu0 0.0
      %1194 = vmatpush.msra.mxu0 0.0
      %1195 = vmatpush.msra.mxu0 0.0
      %1196 = vmatpush.msra.mxu0 %v1119
      %1197 = vmatmul.f32.gmra.mxu0 %v1107
      %v1198 = vpop.f32.mrf.mxu0
      %v1199 = vadd.f32 0.0, %v1198
      %1200 = vdwg.mxu0
      %v1201 = vadd.f32 %v1076, %v1139
      %v1202 = vadd.f32 %v1077, %v1159
      %v1203 = vadd.f32 %v1078, %v1179
      %v1204 = vadd.f32 %v1079, %v1199
      %1205 = vst [vmem:[#allocation1] ss:$2 sm:$0xff] %v227
      %s1206 = scalar_lea.vmem [#allocation1], 16
      %1207 = vst [vmem:[%s1206] ss:$2 sm:$0xff] %v228
      %v1208 = vld.sshfl [vmem:[#allocation1] sm:$0xff pattern:$0x75316420]
      %v1209 = vld.sshfl [vmem:[#allocation1 + $0x8] sm:$0xff pattern:$0x75316420]
      %v1210 = vld.sshfl [vmem:[#allocation1 + $0x10] sm:$0xff pattern:$0x75316420]
      %v1211 = vld.sshfl [vmem:[#allocation1 + $0x18] sm:$0xff pattern:$0x75316420]
      %1216 = vrot.lane.b32.xlu0 %v1208, 90
      %v1217 = vpop.permute.xlu0 %1216
      %1218 = vrot.lane.b32.xlu0 %v1209, 90
      %v1219 = vpop.permute.xlu0 %1218
      %1220 = vrot.lane.b32.xlu0 %v1210, 90
      %v1221 = vpop.permute.xlu0 %1220
      %1222 = vrot.lane.b32.xlu0 %v1211, 90
      %v1223 = vpop.permute.xlu0 %1222
      %vm1224 = vcmp.lt.s32.totalorder %v252, 90
      %v1225 = vsel %vm1224, %v1221, %v1223
      %v1226 = vsel %vm1224, %v1219, %v1221
      %v1227 = vsel %vm1224, %v1217, %v1219
      %v1228 = vsel %vm1224, %v1223, %v1217
      %s1229 = scalar_lea.vmem %s1, 64
      %v1230 = vld [vmem:[%s1229] sm:$0xff]
      %v1232 = vsel %vm260, %v1230, 0
      %v1235 = vsel %vm264, %v1227, 0
      %v1238 = vsel %vm264, %v1226, 0
      %v1241 = vsel %vm264, %v1225, 0
      %v1244 = vsel %vm264, %v1228, 0
      %1246 = vmatpush.msra.mxu0 0.0
      %1247 = vmatpush.msra.mxu0 0.0
      %1248 = vmatpush.msra.mxu0 0.0
      %1249 = vmatpush.msra.mxu0 0.0
      %1250 = vmatpush.msra.mxu0 0.0
      %1251 = vmatpush.msra.mxu0 0.0
      %1252 = vmatpush.msra.mxu0 0.0
      %1253 = vmatpush.msra.mxu0 0.0
      %1254 = vmatpush.msra.mxu0 0.0
      %1255 = vmatpush.msra.mxu0 0.0
      %1256 = vmatpush.msra.mxu0 0.0
      %1257 = vmatpush.msra.mxu0 0.0
      %1258 = vmatpush.msra.mxu0 0.0
      %1259 = vmatpush.msra.mxu0 0.0
      %1260 = vmatpush.msra.mxu0 0.0
      %1261 = vmatpush.msra.mxu0 %v1235
      %1262 = vmatmul.f32.gmra.mxu0 %v1232
      %v1263 = vpop.f32.mrf.mxu0
      %v1264 = vadd.f32 0.0, %v1263
      %1265 = vdwg.mxu0
      %1266 = vmatpush.msra.mxu0 0.0
      %1267 = vmatpush.msra.mxu0 0.0
      %1268 = vmatpush.msra.mxu0 0.0
      %1269 = vmatpush.msra.mxu0 0.0
      %1270 = vmatpush.msra.mxu0 0.0
      %1271 = vmatpush.msra.mxu0 0.0
      %1272 = vmatpush.msra.mxu0 0.0
      %1273 = vmatpush.msra.mxu0 0.0
      %1274 = vmatpush.msra.mxu0 0.0
      %1275 = vmatpush.msra.mxu0 0.0
      %1276 = vmatpush.msra.mxu0 0.0
      %1277 = vmatpush.msra.mxu0 0.0
      %1278 = vmatpush.msra.mxu0 0.0
      %1279 = vmatpush.msra.mxu0 0.0
      %1280 = vmatpush.msra.mxu0 0.0
      %1281 = vmatpush.msra.mxu0 %v1238
      %1282 = vmatmul.f32.gmra.mxu0 %v1232
      %v1283 = vpop.f32.mrf.mxu0
      %v1284 = vadd.f32 0.0, %v1283
      %1285 = vdwg.mxu0
      %1286 = vmatpush.msra.mxu0 0.0
      %1287 = vmatpush.msra.mxu0 0.0
      %1288 = vmatpush.msra.mxu0 0.0
      %1289 = vmatpush.msra.mxu0 0.0
      %1290 = vmatpush.msra.mxu0 0.0
      %1291 = vmatpush.msra.mxu0 0.0
      %1292 = vmatpush.msra.mxu0 0.0
      %1293 = vmatpush.msra.mxu0 0.0
      %1294 = vmatpush.msra.mxu0 0.0
      %1295 = vmatpush.msra.mxu0 0.0
      %1296 = vmatpush.msra.mxu0 0.0
      %1297 = vmatpush.msra.mxu0 0.0
      %1298 = vmatpush.msra.mxu0 0.0
      %1299 = vmatpush.msra.mxu0 0.0
      %1300 = vmatpush.msra.mxu0 0.0
      %1301 = vmatpush.msra.mxu0 %v1241
      %1302 = vmatmul.f32.gmra.mxu0 %v1232
      %v1303 = vpop.f32.mrf.mxu0
      %v1304 = vadd.f32 0.0, %v1303
      %1305 = vdwg.mxu0
      %1306 = vmatpush.msra.mxu0 0.0
      %1307 = vmatpush.msra.mxu0 0.0
      %1308 = vmatpush.msra.mxu0 0.0
      %1309 = vmatpush.msra.mxu0 0.0
      %1310 = vmatpush.msra.mxu0 0.0
      %1311 = vmatpush.msra.mxu0 0.0
      %1312 = vmatpush.msra.mxu0 0.0
      %1313 = vmatpush.msra.mxu0 0.0
      %1314 = vmatpush.msra.mxu0 0.0
      %1315 = vmatpush.msra.mxu0 0.0
      %1316 = vmatpush.msra.mxu0 0.0
      %1317 = vmatpush.msra.mxu0 0.0
      %1318 = vmatpush.msra.mxu0 0.0
      %1319 = vmatpush.msra.mxu0 0.0
      %1320 = vmatpush.msra.mxu0 0.0
      %1321 = vmatpush.msra.mxu0 %v1244
      %1322 = vmatmul.f32.gmra.mxu0 %v1232
      %v1323 = vpop.f32.mrf.mxu0
      %v1324 = vadd.f32 0.0, %v1323
      %1325 = vdwg.mxu0
      %v1326 = vadd.f32 %v1201, %v1264
      %v1327 = vadd.f32 %v1202, %v1284
      %v1328 = vadd.f32 %v1203, %v1304
      %v1329 = vadd.f32 %v1204, %v1324
      %v1330 = vld [vmem:[%s2] sm:$0xff]
      %1332 = vset.pattern.permute.xlu0 0
      %1333 = vperm.xlu0 %1332, %v1330
      %v1334 = vpop.permute.xlu0 %1333
      %v1336 = vmul.f32 %v1326, %v1334
      %v1337 = vmul.f32 %v1327, %v1334
      %v1338 = vmul.f32 %v1328, %v1334
      %v1339 = vmul.f32 %v1329, %v1334
      %v1340 = vld [vmem:[%s3] sm:$0xff]
      %1342 = vset.pattern.permute.xlu0 0
      %1343 = vperm.xlu0 %1342, %v1340
      %v1344 = vpop.permute.xlu0 %1343
      %v1346 = vadd.f32 %v1336, %v1344
      %v1347 = vadd.f32 %v1337, %v1344
      %v1348 = vadd.f32 %v1338, %v1344
      %v1349 = vadd.f32 %v1339, %v1344
      %s1350 = sld [smem:[#allocation2]]
      %vm1351 = vcmp.gt.f32.partialorder %v1346, 0.0
      %vm1352 = vcmp.gt.f32.partialorder %v1347, 0.0
      %vm1353 = vcmp.gt.f32.partialorder %v1348, 0.0
      %vm1354 = vcmp.gt.f32.partialorder %v1349, 0.0
      %v1355 = vstv %s1350
      %v1356 = vmul.f32 %v1355, %v1346
      %v1357 = vmul.f32 %v1355, %v1347
      %v1358 = vmul.f32 %v1355, %v1348
      %v1359 = vmul.f32 %v1355, %v1349
      %v1360 = vsel %vm1351, %v1346, %v1356
      %v1361 = vsel %vm1352, %v1347, %v1357
      %v1362 = vsel %vm1353, %v1348, %v1358
      %v1363 = vsel %vm1354, %v1349, %v1359
      %1364 = vst [vmem:[%s225] sm:$0xff] %v1360
      %1365 = vst [vmem:[%s225 + $0x8] sm:$0xff] %v1361
      %1366 = vst [vmem:[%s225 + $0x10] sm:$0xff] %v1362
      %1367 = vst [vmem:[%s225 + $0x18] sm:$0xff] %v1363
      %p1368 = scmp.lt.s32.totalorder %s17, 1
      %s1369 = scalar_select %p1368, %s17, 1
      %s1370 = smul.addr %s1369, 4
      %s1371 = smul.addr %s1370, 8
      %s1372 = scalar_lea.vmem %s5, %s1371
      // Predicated region
      $region41: #{conv_bn_prelu.3} parent=39 // pred_check
        %p1373 = pneg %p145
      $region42: #{conv_bn_prelu.3} parent=39 // pred_check_branch
        %1375 = sbr.rel (%p1373) target = $region44
      $region43: #{conv_bn_prelu.3} parent=39 // pred_region
        _
      $region44: #{conv_bn_prelu.3} parent=39 // pred_fallthru
        _
    $region40: #{conv_bn_prelu.3} parent=5 // pred_fallthru
      _
    %p1376 = scmp.le.s32.totalorder 2, %s12
    // Predicated region
    $region45: #{conv_bn_prelu.3} parent=5 // pred_check
      %p1377 = pneg %p1376
    $region46: #{conv_bn_prelu.3} parent=5 // pred_check_branch
      %1379 = sbr.rel (%p1377) target = $region48
    $region47: #{conv_bn_prelu.3} parent=5 // pred_region
      %s1380 = ssub.s32 %s12, 2
      // Predicated region
      $region49: #{conv_bn_prelu.3} parent=47 // pred_check
        %p1381 = pneg %p151
      $region50: #{conv_bn_prelu.3} parent=47 // pred_check_branch
        %1383 = sbr.rel (%p1381) target = $region52
      $region51: #{conv_bn_prelu.3} parent=47 // pred_region
        %p1384 = scmp.lt.s32.totalorder %s18, 1
        %s1385 = scalar_select %p1384, %s18, 1
        %s1386 = smul.addr %s1385, 4
        %s1387 = smul.addr %s1386, 8
        %s1388 = scalar_lea.vmem %s5, %s1387
      $region52: #{conv_bn_prelu.3} parent=47 // pred_fallthru
        _
    $region48: #{conv_bn_prelu.3} parent=5 // pred_fallthru
      _
  $region6: #{conv_bn_prelu.3} parent=0 // loop_footer
    %s16 = sadd.s32 1, %s12
  $region7: #{conv_bn_prelu.3} parent=0 // loop_footer_branch
    %11 = sbr.rel target = $region3
  $region8: #{conv_bn_prelu.3} parent=0 // loop_exit
    _

// kernel: conv_bn_prelu.2
$region0: #{conv_bn_prelu.2}
  #allocation0 [shape = 'u32[]', space=smem, size = 0x4, offset = 0x4, fixed_abs, tag = 'smem constant byte address 0x4 - core index']
  #allocation1 [shape = 'u32[72,128]{1,0:T(1,128)}', space=vmem, size = 0x9000, scoped, tag = 'internal scratch']
  %s0 = inlined_call_operand.vmem [shape: bf16[2,4,512], index: 0, kind: input, shape index: {}]
  %s1 = inlined_call_operand.vmem [shape: f32[9,8,4], index: 1, kind: input, shape index: {}]
  %s2 = inlined_call_operand.vmem [shape: f32[1,512], index: 2, kind: input, shape index: {}]
  %s3 = inlined_call_operand.vmem [shape: f32[2,8,2], index: 3, kind: output, shape index: {}]
  %s4 = sld [smem:[#allocation0]]
  $region45: #{conv_bn_prelu.2} parent=0
    _
  %s6 = ssub.s32 1, %s4
  %s7 = scalar_select 0, %s6, %s4
  loop: start=0, step=1, limit=4
  $region2: #{conv_bn_prelu.2} parent=0 // loop_pre_header
    _
  $region3: #{conv_bn_prelu.2} parent=0 // loop_header
    %s9 = sphi 0, %s13
    %p10 = scmp.ge.s32.totalorder %s9, 4
    %s19 = sphi 0, %s21
    %s22 = sphi 0, %s19
    %s23 = sphi 0, %s22
    %s39 = sphi 0, %s23
    %s43 = sphi 0, %s43
    %s45 = sphi 0, %s43
    %s46 = sphi 0, %s45
    %s60 = sphi 0, %s46
    %s64 = sphi 0, %s64
    %s66 = sphi 0, %s64
    %s67 = sphi 0, %s66
    %s81 = sphi 0, %s67
    %s87 = sphi 0, %s89
    %s90 = sphi 0, %s87
    %s91 = sphi 0, %s90
    %s107 = sphi 0, %s91
  $region4: #{conv_bn_prelu.2} parent=0 // loop_header_branch
    %12 = sbr.rel (%p10) target = $region8
  $region5: #{conv_bn_prelu.2} parent=0 // loop_body
    %s14 = ssub.s32 %s9, 1
    %s15 = ssub.s32 %s9, 2
    %s16 = sadd.s32 %s9, 1
    %s17 = ssub.s32 %s9, %s16
    %p18 = scmp.eq.s32.totalorder %s17, 0
    %s20 = sadd.s32 %s19, 1
    %s21 = scalar_select %p18, %s19, %s20
    %p24 = pneg %p18
    %p25 = scmp.eq.s32.totalorder %s9, 1
    %p26 = por %p24, %p25
    %p27 = scmp.ne.s32.totalorder %s19, %s22
    %p28 = scmp.eq.s32.totalorder %s9, 0
    %p29 = por %p27, %p28
    %p30 = scmp.ne.s32.totalorder %s19, %s22
    %p31 = scmp.eq.s32.totalorder %s14, 1
    %p32 = por %p30, %p31
    %p33 = scmp.ne.s32.totalorder %s22, %s23
    %p34 = scmp.eq.s32.totalorder %s14, 0
    %p35 = por %p33, %p34
    %p36 = scmp.ne.s32.totalorder %s22, %s23
    %p37 = scmp.eq.s32.totalorder %s15, 1
    %p38 = por %p36, %p37
    %p40 = scmp.ne.s32.totalorder %s23, %s39
    %p41 = scmp.eq.s32.totalorder %s15, 0
    %p42 = por %p40, %p41
    %s44 = sadd.s32 %s43, 1
    %p47 = scmp.eq.s32.totalorder %s9, 1
    %p48 = scmp.ne.s32.totalorder %s43, %s45
    %p49 = scmp.eq.s32.totalorder %s9, 0
    %p50 = por %p48, %p49
    %p51 = scmp.ne.s32.totalorder %s43, %s45
    %p52 = scmp.eq.s32.totalorder %s14, 1
    %p53 = por %p51, %p52
    %p54 = scmp.ne.s32.totalorder %s45, %s46
    %p55 = scmp.eq.s32.totalorder %s14, 0
    %p56 = por %p54, %p55
    %p57 = scmp.ne.s32.totalorder %s45, %s46
    %p58 = scmp.eq.s32.totalorder %s15, 1
    %p59 = por %p57, %p58
    %p61 = scmp.ne.s32.totalorder %s46, %s60
    %p62 = scmp.eq.s32.totalorder %s15, 0
    %p63 = por %p61, %p62
    %s65 = sadd.s32 %s64, 1
    %p68 = scmp.eq.s32.totalorder %s9, 1
    %p69 = scmp.ne.s32.totalorder %s64, %s66
    %p70 = scmp.eq.s32.totalorder %s9, 0
    %p71 = por %p69, %p70
    %p72 = scmp.ne.s32.totalorder %s64, %s66
    %p73 = scmp.eq.s32.totalorder %s14, 1
    %p74 = por %p72, %p73
    %p75 = scmp.ne.s32.totalorder %s66, %s67
    %p76 = scmp.eq.s32.totalorder %s14, 0
    %p77 = por %p75, %p76
    %p78 = scmp.ne.s32.totalorder %s66, %s67
    %p79 = scmp.eq.s32.totalorder %s15, 1
    %p80 = por %p78, %p79
    %p82 = scmp.ne.s32.totalorder %s67, %s81
    %p83 = scmp.eq.s32.totalorder %s15, 0
    %p84 = por %p82, %p83
    %s85 = ssub.s32 %s9, %s16
    %p86 = scmp.eq.s32.totalorder %s85, 0
    %s88 = sadd.s32 %s87, 1
    %s89 = scalar_select %p86, %s87, %s88
    %p92 = pneg %p86
    %p93 = scmp.eq.s32.totalorder %s9, 1
    %p94 = por %p92, %p93
    %p95 = scmp.ne.s32.totalorder %s87, %s90
    %p96 = scmp.eq.s32.totalorder %s9, 0
    %p97 = por %p95, %p96
    %p98 = scmp.ne.s32.totalorder %s87, %s90
    %p99 = scmp.eq.s32.totalorder %s14, 1
    %p100 = por %p98, %p99
    %p101 = scmp.ne.s32.totalorder %s90, %s91
    %p102 = scmp.eq.s32.totalorder %s14, 0
    %p103 = por %p101, %p102
    %p104 = scmp.ne.s32.totalorder %s90, %s91
    %p105 = scmp.eq.s32.totalorder %s15, 1
    %p106 = por %p104, %p105
    %p108 = scmp.ne.s32.totalorder %s91, %s107
    %p109 = scmp.eq.s32.totalorder %s15, 0
    %p110 = por %p108, %p109
    %p111 = scmp.le.s32.totalorder 1, %s9
    %p112 = scmp.lt.s32.totalorder %s9, 3
    %p113 = pnand %p111, %p112
    %p114 = pneg %p113
    // Predicated region
    $region9: #{conv_bn_prelu.2} parent=5 // pred_check
      _
    $region10: #{conv_bn_prelu.2} parent=5 // pred_check_branch
      %116 = sbr.rel (%p113) target = $region12
    $region11: #{conv_bn_prelu.2} parent=5 // pred_region
      %s117 = ssub.s32 %s9, 1
      // Predicated region
      $region13: #{conv_bn_prelu.2} parent=11 // pred_check
        %p118 = pneg %p56
      $region14: #{conv_bn_prelu.2} parent=11 // pred_check_branch
        %120 = sbr.rel (%p118) target = $region16
      $region15: #{conv_bn_prelu.2} parent=11 // pred_region
        _
      $region16: #{conv_bn_prelu.2} parent=11 // pred_fallthru
        _
      // Predicated region
      $region17: #{conv_bn_prelu.2} parent=11 // pred_check
        %p121 = pneg %p77
      $region18: #{conv_bn_prelu.2} parent=11 // pred_check_branch
        %123 = sbr.rel (%p121) target = $region20
      $region19: #{conv_bn_prelu.2} parent=11 // pred_region
        _
      $region20: #{conv_bn_prelu.2} parent=11 // pred_fallthru
        _
    $region12: #{conv_bn_prelu.2} parent=5 // pred_fallthru
      _
    %p124 = scmp.lt.s32.totalorder %s9, 2
    // Predicated region
    $region21: #{conv_bn_prelu.2} parent=5 // pred_check
      %p125 = pneg %p124
    $region22: #{conv_bn_prelu.2} parent=5 // pred_check_branch
      %127 = sbr.rel (%p125) target = $region24
    $region23: #{conv_bn_prelu.2} parent=5 // pred_region
      // Predicated region
      $region25: #{conv_bn_prelu.2} parent=23 // pred_check
        %p128 = pneg %p29
      $region26: #{conv_bn_prelu.2} parent=23 // pred_check_branch
        %130 = sbr.rel (%p128) target = $region28
      $region27: #{conv_bn_prelu.2} parent=23 // pred_region
        %p131 = scmp.lt.s32.totalorder %s9, 1
        %s132 = scalar_select %p131, %s9, 1
        %s133 = smul.addr %s132, 4
        %s134 = smul.addr %s133, 2
        %s135 = scalar_lea.vmem %s0, %s134
      $region28: #{conv_bn_prelu.2} parent=23 // pred_fallthru
        _
    $region24: #{conv_bn_prelu.2} parent=5 // pred_fallthru
      _
    %p136 = scmp.le.s32.totalorder 1, %s9
    %p137 = scmp.lt.s32.totalorder %s9, 3
    %p138 = pnand %p136, %p137
    %p139 = pneg %p138
    // Predicated region
    $region29: #{conv_bn_prelu.2} parent=5 // pred_check
      _
    $region30: #{conv_bn_prelu.2} parent=5 // pred_check_branch
      %141 = sbr.rel (%p138) target = $region32
    $region31: #{conv_bn_prelu.2} parent=5 // pred_region
      %s142 = ssub.s32 %s9, 1
      %p143 = scmp.lt.s32.totalorder %s14, 1
      %s144 = scalar_select %p143, %s14, 1
      %s145 = smul.addr %s144, 4
      %s146 = smul.addr %s145, 2
      %s147 = scalar_lea.vmem %s0, %s146
      %p148 = pneg %p35
      %p149 = pneg %p32
      %p150 = pneg %p56
      %p151 = pneg %p53
      %p152 = pneg %p77
      %p153 = pneg %p74
      %p154 = pneg %p103
      %p155 = pneg %p100
      %p156 = scmp.lt.s32.totalorder %s14, 1
      %s157 = scalar_select %p156, %s14, 1
      %s158 = smul.addr %s157, 8
      %s159 = scalar_lea.vmem %s3, %s158
      %p160 = scmp.lt.s32.totalorder %s14, 1
      %s161 = scalar_select %p160, %s14, 1
      %s162 = smul.addr %s161, 4
      %s163 = smul.addr %s162, 2
      %s164 = scalar_lea.vmem %s0, %s163
      %p165 = scmp.lt.s32.totalorder %s14, 1
      %s166 = scalar_select %p165, %s14, 1
      %s167 = smul.addr %s166, 8
      %s168 = scalar_lea.vmem %s3, %s167
      %v169 = vld [vmem:[%s164] sm:$0xff]
      %v170 = vunpack.c.l.bf16 %v169
      %v171 = vunpack.c.h.bf16 %v169
      %v172 = vld [vmem:[%s1] sm:$0xff]
      %175 = vst [vmem:[#allocation1] ss:$2 sm:$0xff] %v170
      %s176 = scalar_lea.vmem [#allocation1], 16
      %177 = vst [vmem:[%s176] ss:$2 sm:$0xff] %v171
      %v178 = vld.sshfl [vmem:[#allocation1] sm:$0xff pattern:$0x75316420]
      %v179 = vld.sshfl [vmem:[#allocation1 + $0x8] sm:$0xff pattern:$0x75316420]
      %v180 = vld.sshfl [vmem:[#allocation1 + $0x10] sm:$0xff pattern:$0x75316420]
      %v181 = vld.sshfl [vmem:[#allocation1 + $0x18] sm:$0xff pattern:$0x75316420]
      %186 = vrot.lane.b32.xlu0 %v178, 127
      %v187 = vpop.permute.xlu0 %186
      %188 = vrot.lane.b32.xlu0 %v179, 127
      %v189 = vpop.permute.xlu0 %188
      %190 = vrot.lane.b32.xlu0 %v180, 127
      %v191 = vpop.permute.xlu0 %190
      %192 = vrot.lane.b32.xlu0 %v181, 127
      %v193 = vpop.permute.xlu0 %192
      %v194 = vlaneseq
      %v195 = vand.u32 %v194, 127
      %vm196 = vcmp.lt.s32.totalorder %v195, 127
      %v197 = vsel %vm196, %v191, %v193
      %v198 = vsel %vm196, %v189, %v191
      %v199 = vsel %vm196, %v187, %v189
      %v200 = vsel %vm196, %v193, %v187
      %s201 = scalar_lea.vmem %s1, 8
      %v202 = vld [vmem:[%s201] sm:$0xff]
      %vm203 = vcmask 31744
      %v205 = vsel %vm203, %v202, 0
      %vm207 = vcmask 1043456
      %v209 = vsel %vm207, %v199, 0
      %v212 = vsel %vm207, %v198, 0
      %v215 = vsel %vm207, %v197, 0
      %v218 = vsel %vm207, %v200, 0
      %220 = vmatpush.msra.mxu0 0.0
      %221 = vmatpush.msra.mxu0 0.0
      %222 = vmatpush.msra.mxu0 0.0
      %223 = vmatpush.msra.mxu0 0.0
      %224 = vmatpush.msra.mxu0 0.0
      %225 = vmatpush.msra.mxu0 0.0
      %226 = vmatpush.msra.mxu0 0.0
      %227 = vmatpush.msra.mxu0 0.0
      %228 = vmatpush.msra.mxu0 0.0
      %229 = vmatpush.msra.mxu0 0.0
      %230 = vmatpush.msra.mxu0 0.0
      %231 = vmatpush.msra.mxu0 0.0
      %232 = vmatpush.msra.mxu0 0.0
      %233 = vmatpush.msra.mxu0 0.0
      %234 = vmatpush.msra.mxu0 0.0
      %235 = vmatpush.msra.mxu0 %v209
      %236 = vmatmul.f32.gmra.mxu0 %v205
      %v237 = vpop.f32.mrf.mxu0
      %v238 = vadd.f32 0.0, %v237
      %239 = vdwg.mxu0
      %240 = vmatpush.msra.mxu0 0.0
      %241 = vmatpush.msra.mxu0 0.0
      %242 = vmatpush.msra.mxu0 0.0
      %243 = vmatpush.msra.mxu0 0.0
      %244 = vmatpush.msra.mxu0 0.0
      %245 = vmatpush.msra.mxu0 0.0
      %246 = vmatpush.msra.mxu0 0.0
      %247 = vmatpush.msra.mxu0 0.0
      %248 = vmatpush.msra.mxu0 0.0
      %249 = vmatpush.msra.mxu0 0.0
      %250 = vmatpush.msra.mxu0 0.0
      %251 = vmatpush.msra.mxu0 0.0
      %252 = vmatpush.msra.mxu0 0.0
      %253 = vmatpush.msra.mxu0 0.0
      %254 = vmatpush.msra.mxu0 0.0
      %255 = vmatpush.msra.mxu0 %v212
      %256 = vmatmul.f32.gmra.mxu0 %v205
      %v257 = vpop.f32.mrf.mxu0
      %v258 = vadd.f32 0.0, %v257
      %259 = vdwg.mxu0
      %260 = vmatpush.msra.mxu0 0.0
      %261 = vmatpush.msra.mxu0 0.0
      %262 = vmatpush.msra.mxu0 0.0
      %263 = vmatpush.msra.mxu0 0.0
      %264 = vmatpush.msra.mxu0 0.0
      %265 = vmatpush.msra.mxu0 0.0
      %266 = vmatpush.msra.mxu0 0.0
      %267 = vmatpush.msra.mxu0 0.0
      %268 = vmatpush.msra.mxu0 0.0
      %269 = vmatpush.msra.mxu0 0.0
      %270 = vmatpush.msra.mxu0 0.0
      %271 = vmatpush.msra.mxu0 0.0
      %272 = vmatpush.msra.mxu0 0.0
      %273 = vmatpush.msra.mxu0 0.0
      %274 = vmatpush.msra.mxu0 0.0
      %275 = vmatpush.msra.mxu0 %v215
      %276 = vmatmul.f32.gmra.mxu0 %v205
      %v277 = vpop.f32.mrf.mxu0
      %v278 = vadd.f32 0.0, %v277
      %279 = vdwg.mxu0
      %280 = vmatpush.msra.mxu0 0.0
      %281 = vmatpush.msra.mxu0 0.0
      %282 = vmatpush.msra.mxu0 0.0
      %283 = vmatpush.msra.mxu0 0.0
      %284 = vmatpush.msra.mxu0 0.0
      %285 = vmatpush.msra.mxu0 0.0
      %286 = vmatpush.msra.mxu0 0.0
      %287 = vmatpush.msra.mxu0 0.0
      %288 = vmatpush.msra.mxu0 0.0
      %289 = vmatpush.msra.mxu0 0.0
      %290 = vmatpush.msra.mxu0 0.0
      %291 = vmatpush.msra.mxu0 0.0
      %292 = vmatpush.msra.mxu0 0.0
      %293 = vmatpush.msra.mxu0 0.0
      %294 = vmatpush.msra.mxu0 0.0
      %295 = vmatpush.msra.mxu0 %v218
      %296 = vmatmul.f32.gmra.mxu0 %v205
      %v297 = vpop.f32.mrf.mxu0
      %v298 = vadd.f32 0.0, %v297
      %299 = vdwg.mxu0
      %300 = vst [vmem:[#allocation1] ss:$2 sm:$0xff] %v170
      %s301 = scalar_lea.vmem [#allocation1], 16
      %302 = vst [vmem:[%s301] ss:$2 sm:$0xff] %v171
      %v303 = vld.sshfl [vmem:[#allocation1] sm:$0xff pattern:$0x75316420]
      %v304 = vld.sshfl [vmem:[#allocation1 + $0x8] sm:$0xff pattern:$0x75316420]
      %v305 = vld.sshfl [vmem:[#allocation1 + $0x10] sm:$0xff pattern:$0x75316420]
      %v306 = vld.sshfl [vmem:[#allocation1 + $0x18] sm:$0xff pattern:$0x75316420]
      %v308 = vsel %vm203, %v172, 0
      %v310 = vsel %vm207, %v303, 0
      %v312 = vsel %vm207, %v304, 0
      %v314 = vsel %vm207, %v305, 0
      %v316 = vsel %vm207, %v306, 0
      %318 = vmatpush.msra.mxu0 0.0
      %319 = vmatpush.msra.mxu0 0.0
      %320 = vmatpush.msra.mxu0 0.0
      %321 = vmatpush.msra.mxu0 0.0
      %322 = vmatpush.msra.mxu0 0.0
      %323 = vmatpush.msra.mxu0 0.0
      %324 = vmatpush.msra.mxu0 0.0
      %325 = vmatpush.msra.mxu0 0.0
      %326 = vmatpush.msra.mxu0 0.0
      %327 = vmatpush.msra.mxu0 0.0
      %328 = vmatpush.msra.mxu0 0.0
      %329 = vmatpush.msra.mxu0 0.0
      %330 = vmatpush.msra.mxu0 0.0
      %331 = vmatpush.msra.mxu0 0.0
      %332 = vmatpush.msra.mxu0 0.0
      %333 = vmatpush.msra.mxu0 %v310
      %334 = vmatmul.f32.gmra.mxu0 %v308
      %v335 = vpop.f32.mrf.mxu0
      %v336 = vadd.f32 %v238, %v335
      %337 = vdwg.mxu0
      %338 = vmatpush.msra.mxu0 0.0
      %339 = vmatpush.msra.mxu0 0.0
      %340 = vmatpush.msra.mxu0 0.0
      %341 = vmatpush.msra.mxu0 0.0
      %342 = vmatpush.msra.mxu0 0.0
      %343 = vmatpush.msra.mxu0 0.0
      %344 = vmatpush.msra.mxu0 0.0
      %345 = vmatpush.msra.mxu0 0.0
      %346 = vmatpush.msra.mxu0 0.0
      %347 = vmatpush.msra.mxu0 0.0
      %348 = vmatpush.msra.mxu0 0.0
      %349 = vmatpush.msra.mxu0 0.0
      %350 = vmatpush.msra.mxu0 0.0
      %351 = vmatpush.msra.mxu0 0.0
      %352 = vmatpush.msra.mxu0 0.0
      %353 = vmatpush.msra.mxu0 %v312
      %354 = vmatmul.f32.gmra.mxu0 %v308
      %v355 = vpop.f32.mrf.mxu0
      %v356 = vadd.f32 %v258, %v355
      %357 = vdwg.mxu0
      %358 = vmatpush.msra.mxu0 0.0
      %359 = vmatpush.msra.mxu0 0.0
      %360 = vmatpush.msra.mxu0 0.0
      %361 = vmatpush.msra.mxu0 0.0
      %362 = vmatpush.msra.mxu0 0.0
      %363 = vmatpush.msra.mxu0 0.0
      %364 = vmatpush.msra.mxu0 0.0
      %365 = vmatpush.msra.mxu0 0.0
      %366 = vmatpush.msra.mxu0 0.0
      %367 = vmatpush.msra.mxu0 0.0
      %368 = vmatpush.msra.mxu0 0.0
      %369 = vmatpush.msra.mxu0 0.0
      %370 = vmatpush.msra.mxu0 0.0
      %371 = vmatpush.msra.mxu0 0.0
      %372 = vmatpush.msra.mxu0 0.0
      %373 = vmatpush.msra.mxu0 %v314
      %374 = vmatmul.f32.gmra.mxu0 %v308
      %v375 = vpop.f32.mrf.mxu0
      %v376 = vadd.f32 %v278, %v375
      %377 = vdwg.mxu0
      %378 = vmatpush.msra.mxu0 0.0
      %379 = vmatpush.msra.mxu0 0.0
      %380 = vmatpush.msra.mxu0 0.0
      %381 = vmatpush.msra.mxu0 0.0
      %382 = vmatpush.msra.mxu0 0.0
      %383 = vmatpush.msra.mxu0 0.0
      %384 = vmatpush.msra.mxu0 0.0
      %385 = vmatpush.msra.mxu0 0.0
      %386 = vmatpush.msra.mxu0 0.0
      %387 = vmatpush.msra.mxu0 0.0
      %388 = vmatpush.msra.mxu0 0.0
      %389 = vmatpush.msra.mxu0 0.0
      %390 = vmatpush.msra.mxu0 0.0
      %391 = vmatpush.msra.mxu0 0.0
      %392 = vmatpush.msra.mxu0 0.0
      %393 = vmatpush.msra.mxu0 %v316
      %394 = vmatmul.f32.gmra.mxu0 %v308
      %v395 = vpop.f32.mrf.mxu0
      %v396 = vadd.f32 %v298, %v395
      %397 = vdwg.mxu0
      %398 = vst [vmem:[#allocation1] ss:$2 sm:$0xff] %v170
      %s399 = scalar_lea.vmem [#allocation1], 16
      %400 = vst [vmem:[%s399] ss:$2 sm:$0xff] %v171
      %v401 = vld.sshfl [vmem:[#allocation1] sm:$0xff pattern:$0x75316420]
      %v402 = vld.sshfl [vmem:[#allocation1 + $0x8] sm:$0xff pattern:$0x75316420]
      %v403 = vld.sshfl [vmem:[#allocation1 + $0x10] sm:$0xff pattern:$0x75316420]
      %v404 = vld.sshfl [vmem:[#allocation1 + $0x18] sm:$0xff pattern:$0x75316420]
      %409 = vrot.lane.b32.xlu0 %v401, 126
      %v410 = vpop.permute.xlu0 %409
      %411 = vrot.lane.b32.xlu0 %v402, 126
      %v412 = vpop.permute.xlu0 %411
      %413 = vrot.lane.b32.xlu0 %v403, 126
      %v414 = vpop.permute.xlu0 %413
      %415 = vrot.lane.b32.xlu0 %v404, 126
      %v416 = vpop.permute.xlu0 %415
      %vm417 = vcmp.lt.s32.totalorder %v195, 126
      %v418 = vsel %vm417, %v414, %v416
      %v419 = vsel %vm417, %v412, %v414
      %v420 = vsel %vm417, %v410, %v412
      %v421 = vsel %vm417, %v416, %v410
      %s422 = scalar_lea.vmem %s1, 16
      %v423 = vld [vmem:[%s422] sm:$0xff]
      %v425 = vsel %vm203, %v423, 0
      %v428 = vsel %vm207, %v420, 0
      %v431 = vsel %vm207, %v419, 0
      %v434 = vsel %vm207, %v418, 0
      %v437 = vsel %vm207, %v421, 0
      %439 = vmatpush.msra.mxu0 0.0
      %440 = vmatpush.msra.mxu0 0.0
      %441 = vmatpush.msra.mxu0 0.0
      %442 = vmatpush.msra.mxu0 0.0
      %443 = vmatpush.msra.mxu0 0.0
      %444 = vmatpush.msra.mxu0 0.0
      %445 = vmatpush.msra.mxu0 0.0
      %446 = vmatpush.msra.mxu0 0.0
      %447 = vmatpush.msra.mxu0 0.0
      %448 = vmatpush.msra.mxu0 0.0
      %449 = vmatpush.msra.mxu0 0.0
      %450 = vmatpush.msra.mxu0 0.0
      %451 = vmatpush.msra.mxu0 0.0
      %452 = vmatpush.msra.mxu0 0.0
      %453 = vmatpush.msra.mxu0 0.0
      %454 = vmatpush.msra.mxu0 %v428
      %455 = vmatmul.f32.gmra.mxu0 %v425
      %v456 = vpop.f32.mrf.mxu0
      %v457 = vadd.f32 0.0, %v456
      %458 = vdwg.mxu0
      %459 = vmatpush.msra.mxu0 0.0
      %460 = vmatpush.msra.mxu0 0.0
      %461 = vmatpush.msra.mxu0 0.0
      %462 = vmatpush.msra.mxu0 0.0
      %463 = vmatpush.msra.mxu0 0.0
      %464 = vmatpush.msra.mxu0 0.0
      %465 = vmatpush.msra.mxu0 0.0
      %466 = vmatpush.msra.mxu0 0.0
      %467 = vmatpush.msra.mxu0 0.0
      %468 = vmatpush.msra.mxu0 0.0
      %469 = vmatpush.msra.mxu0 0.0
      %470 = vmatpush.msra.mxu0 0.0
      %471 = vmatpush.msra.mxu0 0.0
      %472 = vmatpush.msra.mxu0 0.0
      %473 = vmatpush.msra.mxu0 0.0
      %474 = vmatpush.msra.mxu0 %v431
      %475 = vmatmul.f32.gmra.mxu0 %v425
      %v476 = vpop.f32.mrf.mxu0
      %v477 = vadd.f32 0.0, %v476
      %478 = vdwg.mxu0
      %479 = vmatpush.msra.mxu0 0.0
      %480 = vmatpush.msra.mxu0 0.0
      %481 = vmatpush.msra.mxu0 0.0
      %482 = vmatpush.msra.mxu0 0.0
      %483 = vmatpush.msra.mxu0 0.0
      %484 = vmatpush.msra.mxu0 0.0
      %485 = vmatpush.msra.mxu0 0.0
      %486 = vmatpush.msra.mxu0 0.0
      %487 = vmatpush.msra.mxu0 0.0
      %488 = vmatpush.msra.mxu0 0.0
      %489 = vmatpush.msra.mxu0 0.0
      %490 = vmatpush.msra.mxu0 0.0
      %491 = vmatpush.msra.mxu0 0.0
      %492 = vmatpush.msra.mxu0 0.0
      %493 = vmatpush.msra.mxu0 0.0
      %494 = vmatpush.msra.mxu0 %v434
      %495 = vmatmul.f32.gmra.mxu0 %v425
      %v496 = vpop.f32.mrf.mxu0
      %v497 = vadd.f32 0.0, %v496
      %498 = vdwg.mxu0
      %499 = vmatpush.msra.mxu0 0.0
      %500 = vmatpush.msra.mxu0 0.0
      %501 = vmatpush.msra.mxu0 0.0
      %502 = vmatpush.msra.mxu0 0.0
      %503 = vmatpush.msra.mxu0 0.0
      %504 = vmatpush.msra.mxu0 0.0
      %505 = vmatpush.msra.mxu0 0.0
      %506 = vmatpush.msra.mxu0 0.0
      %507 = vmatpush.msra.mxu0 0.0
      %508 = vmatpush.msra.mxu0 0.0
      %509 = vmatpush.msra.mxu0 0.0
      %510 = vmatpush.msra.mxu0 0.0
      %511 = vmatpush.msra.mxu0 0.0
      %512 = vmatpush.msra.mxu0 0.0
      %513 = vmatpush.msra.mxu0 0.0
      %514 = vmatpush.msra.mxu0 %v437
      %515 = vmatmul.f32.gmra.mxu0 %v425
      %v516 = vpop.f32.mrf.mxu0
      %v517 = vadd.f32 0.0, %v516
      %518 = vdwg.mxu0
      %v519 = vadd.f32 %v336, %v457
      %v520 = vadd.f32 %v356, %v477
      %v521 = vadd.f32 %v376, %v497
      %v522 = vadd.f32 %v396, %v517
      %523 = vst [vmem:[#allocation1] ss:$2 sm:$0xff] %v170
      %s524 = scalar_lea.vmem [#allocation1], 16
      %525 = vst [vmem:[%s524] ss:$2 sm:$0xff] %v171
      %v526 = vld.sshfl [vmem:[#allocation1] sm:$0xff pattern:$0x75316420]
      %v527 = vld.sshfl [vmem:[#allocation1 + $0x8] sm:$0xff pattern:$0x75316420]
      %v528 = vld.sshfl [vmem:[#allocation1 + $0x10] sm:$0xff pattern:$0x75316420]
      %v529 = vld.sshfl [vmem:[#allocation1 + $0x18] sm:$0xff pattern:$0x75316420]
      %534 = vrot.lane.b32.xlu0 %v526, 110
      %v535 = vpop.permute.xlu0 %534
      %536 = vrot.lane.b32.xlu0 %v527, 110
      %v537 = vpop.permute.xlu0 %536
      %538 = vrot.lane.b32.xlu0 %v528, 110
      %v539 = vpop.permute.xlu0 %538
      %540 = vrot.lane.b32.xlu0 %v529, 110
      %v541 = vpop.permute.xlu0 %540
      %vm542 = vcmp.lt.s32.totalorder %v195, 110
      %v543 = vsel %vm542, %v539, %v541
      %v544 = vsel %vm542, %v537, %v539
      %v545 = vsel %vm542, %v535, %v537
      %v546 = vsel %vm542, %v541, %v535
      %s547 = scalar_lea.vmem %s1, 24
      %v548 = vld [vmem:[%s547] sm:$0xff]
      %v550 = vsel %vm203, %v548, 0
      %v553 = vsel %vm207, %v545, 0
      %v556 = vsel %vm207, %v544, 0
      %v559 = vsel %vm207, %v543, 0
      %v562 = vsel %vm207, %v546, 0
      %564 = vmatpush.msra.mxu0 0.0
      %565 = vmatpush.msra.mxu0 0.0
      %566 = vmatpush.msra.mxu0 0.0
      %567 = vmatpush.msra.mxu0 0.0
      %568 = vmatpush.msra.mxu0 0.0
      %569 = vmatpush.msra.mxu0 0.0
      %570 = vmatpush.msra.mxu0 0.0
      %571 = vmatpush.msra.mxu0 0.0
      %572 = vmatpush.msra.mxu0 0.0
      %573 = vmatpush.msra.mxu0 0.0
      %574 = vmatpush.msra.mxu0 0.0
      %575 = vmatpush.msra.mxu0 0.0
      %576 = vmatpush.msra.mxu0 0.0
      %577 = vmatpush.msra.mxu0 0.0
      %578 = vmatpush.msra.mxu0 0.0
      %579 = vmatpush.msra.mxu0 %v553
      %580 = vmatmul.f32.gmra.mxu0 %v550
      %v581 = vpop.f32.mrf.mxu0
      %v582 = vadd.f32 0.0, %v581
      %583 = vdwg.mxu0
      %584 = vmatpush.msra.mxu0 0.0
      %585 = vmatpush.msra.mxu0 0.0
      %586 = vmatpush.msra.mxu0 0.0
      %587 = vmatpush.msra.mxu0 0.0
      %588 = vmatpush.msra.mxu0 0.0
      %589 = vmatpush.msra.mxu0 0.0
      %590 = vmatpush.msra.mxu0 0.0
      %591 = vmatpush.msra.mxu0 0.0
      %592 = vmatpush.msra.mxu0 0.0
      %593 = vmatpush.msra.mxu0 0.0
      %594 = vmatpush.msra.mxu0 0.0
      %595 = vmatpush.msra.mxu0 0.0
      %596 = vmatpush.msra.mxu0 0.0
      %597 = vmatpush.msra.mxu0 0.0
      %598 = vmatpush.msra.mxu0 0.0
      %599 = vmatpush.msra.mxu0 %v556
      %600 = vmatmul.f32.gmra.mxu0 %v550
      %v601 = vpop.f32.mrf.mxu0
      %v602 = vadd.f32 0.0, %v601
      %603 = vdwg.mxu0
      %604 = vmatpush.msra.mxu0 0.0
      %605 = vmatpush.msra.mxu0 0.0
      %606 = vmatpush.msra.mxu0 0.0
      %607 = vmatpush.msra.mxu0 0.0
      %608 = vmatpush.msra.mxu0 0.0
      %609 = vmatpush.msra.mxu0 0.0
      %610 = vmatpush.msra.mxu0 0.0
      %611 = vmatpush.msra.mxu0 0.0
      %612 = vmatpush.msra.mxu0 0.0
      %613 = vmatpush.msra.mxu0 0.0
      %614 = vmatpush.msra.mxu0 0.0
      %615 = vmatpush.msra.mxu0 0.0
      %616 = vmatpush.msra.mxu0 0.0
      %617 = vmatpush.msra.mxu0 0.0
      %618 = vmatpush.msra.mxu0 0.0
      %619 = vmatpush.msra.mxu0 %v559
      %620 = vmatmul.f32.gmra.mxu0 %v550
      %v621 = vpop.f32.mrf.mxu0
      %v622 = vadd.f32 0.0, %v621
      %623 = vdwg.mxu0
      %624 = vmatpush.msra.mxu0 0.0
      %625 = vmatpush.msra.mxu0 0.0
      %626 = vmatpush.msra.mxu0 0.0
      %627 = vmatpush.msra.mxu0 0.0
      %628 = vmatpush.msra.mxu0 0.0
      %629 = vmatpush.msra.mxu0 0.0
      %630 = vmatpush.msra.mxu0 0.0
      %631 = vmatpush.msra.mxu0 0.0
      %632 = vmatpush.msra.mxu0 0.0
      %633 = vmatpush.msra.mxu0 0.0
      %634 = vmatpush.msra.mxu0 0.0
      %635 = vmatpush.msra.mxu0 0.0
      %636 = vmatpush.msra.mxu0 0.0
      %637 = vmatpush.msra.mxu0 0.0
      %638 = vmatpush.msra.mxu0 0.0
      %639 = vmatpush.msra.mxu0 %v562
      %640 = vmatmul.f32.gmra.mxu0 %v550
      %v641 = vpop.f32.mrf.mxu0
      %v642 = vadd.f32 0.0, %v641
      %643 = vdwg.mxu0
      %v644 = vadd.f32 %v519, %v582
      %v645 = vadd.f32 %v520, %v602
      %v646 = vadd.f32 %v521, %v622
      %v647 = vadd.f32 %v522, %v642
      %648 = vst [vmem:[#allocation1] ss:$2 sm:$0xff] %v170
      %s649 = scalar_lea.vmem [#allocation1], 16
      %650 = vst [vmem:[%s649] ss:$2 sm:$0xff] %v171
      %v651 = vld.sshfl [vmem:[#allocation1] sm:$0xff pattern:$0x75316420]
      %v652 = vld.sshfl [vmem:[#allocation1 + $0x8] sm:$0xff pattern:$0x75316420]
      %v653 = vld.sshfl [vmem:[#allocation1 + $0x10] sm:$0xff pattern:$0x75316420]
      %v654 = vld.sshfl [vmem:[#allocation1 + $0x18] sm:$0xff pattern:$0x75316420]
      %659 = vrot.lane.b32.xlu0 %v651, 109
      %v660 = vpop.permute.xlu0 %659
      %661 = vrot.lane.b32.xlu0 %v652, 109
      %v662 = vpop.permute.xlu0 %661
      %663 = vrot.lane.b32.xlu0 %v653, 109
      %v664 = vpop.permute.xlu0 %663
      %665 = vrot.lane.b32.xlu0 %v654, 109
      %v666 = vpop.permute.xlu0 %665
      %vm667 = vcmp.lt.s32.totalorder %v195, 109
      %v668 = vsel %vm667, %v664, %v666
      %v669 = vsel %vm667, %v662, %v664
      %v670 = vsel %vm667, %v660, %v662
      %v671 = vsel %vm667, %v666, %v660
      %s672 = scalar_lea.vmem %s1, 32
      %v673 = vld [vmem:[%s672] sm:$0xff]
      %v675 = vsel %vm203, %v673, 0
      %v678 = vsel %vm207, %v670, 0
      %v681 = vsel %vm207, %v669, 0
      %v684 = vsel %vm207, %v668, 0
      %v687 = vsel %vm207, %v671, 0
      %689 = vmatpush.msra.mxu0 0.0
      %690 = vmatpush.msra.mxu0 0.0
      %691 = vmatpush.msra.mxu0 0.0
      %692 = vmatpush.msra.mxu0 0.0
      %693 = vmatpush.msra.mxu0 0.0
      %694 = vmatpush.msra.mxu0 0.0
      %695 = vmatpush.msra.mxu0 0.0
      %696 = vmatpush.msra.mxu0 0.0
      %697 = vmatpush.msra.mxu0 0.0
      %698 = vmatpush.msra.mxu0 0.0
      %699 = vmatpush.msra.mxu0 0.0
      %700 = vmatpush.msra.mxu0 0.0
      %701 = vmatpush.msra.mxu0 0.0
      %702 = vmatpush.msra.mxu0 0.0
      %703 = vmatpush.msra.mxu0 0.0
      %704 = vmatpush.msra.mxu0 %v678
      %705 = vmatmul.f32.gmra.mxu0 %v675
      %v706 = vpop.f32.mrf.mxu0
      %v707 = vadd.f32 0.0, %v706
      %708 = vdwg.mxu0
      %709 = vmatpush.msra.mxu0 0.0
      %710 = vmatpush.msra.mxu0 0.0
      %711 = vmatpush.msra.mxu0 0.0
      %712 = vmatpush.msra.mxu0 0.0
      %713 = vmatpush.msra.mxu0 0.0
      %714 = vmatpush.msra.mxu0 0.0
      %715 = vmatpush.msra.mxu0 0.0
      %716 = vmatpush.msra.mxu0 0.0
      %717 = vmatpush.msra.mxu0 0.0
      %718 = vmatpush.msra.mxu0 0.0
      %719 = vmatpush.msra.mxu0 0.0
      %720 = vmatpush.msra.mxu0 0.0
      %721 = vmatpush.msra.mxu0 0.0
      %722 = vmatpush.msra.mxu0 0.0
      %723 = vmatpush.msra.mxu0 0.0
      %724 = vmatpush.msra.mxu0 %v681
      %725 = vmatmul.f32.gmra.mxu0 %v675
      %v726 = vpop.f32.mrf.mxu0
      %v727 = vadd.f32 0.0, %v726
      %728 = vdwg.mxu0
      %729 = vmatpush.msra.mxu0 0.0
      %730 = vmatpush.msra.mxu0 0.0
      %731 = vmatpush.msra.mxu0 0.0
      %732 = vmatpush.msra.mxu0 0.0
      %733 = vmatpush.msra.mxu0 0.0
      %734 = vmatpush.msra.mxu0 0.0
      %735 = vmatpush.msra.mxu0 0.0
      %736 = vmatpush.msra.mxu0 0.0
      %737 = vmatpush.msra.mxu0 0.0
      %738 = vmatpush.msra.mxu0 0.0
      %739 = vmatpush.msra.mxu0 0.0
      %740 = vmatpush.msra.mxu0 0.0
      %741 = vmatpush.msra.mxu0 0.0
      %742 = vmatpush.msra.mxu0 0.0
      %743 = vmatpush.msra.mxu0 0.0
      %744 = vmatpush.msra.mxu0 %v684
      %745 = vmatmul.f32.gmra.mxu0 %v675
      %v746 = vpop.f32.mrf.mxu0
      %v747 = vadd.f32 0.0, %v746
      %748 = vdwg.mxu0
      %749 = vmatpush.msra.mxu0 0.0
      %750 = vmatpush.msra.mxu0 0.0
      %751 = vmatpush.msra.mxu0 0.0
      %752 = vmatpush.msra.mxu0 0.0
      %753 = vmatpush.msra.mxu0 0.0
      %754 = vmatpush.msra.mxu0 0.0
      %755 = vmatpush.msra.mxu0 0.0
      %756 = vmatpush.msra.mxu0 0.0
      %757 = vmatpush.msra.mxu0 0.0
      %758 = vmatpush.msra.mxu0 0.0
      %759 = vmatpush.msra.mxu0 0.0
      %760 = vmatpush.msra.mxu0 0.0
      %761 = vmatpush.msra.mxu0 0.0
      %762 = vmatpush.msra.mxu0 0.0
      %763 = vmatpush.msra.mxu0 0.0
      %764 = vmatpush.msra.mxu0 %v687
      %765 = vmatmul.f32.gmra.mxu0 %v675
      %v766 = vpop.f32.mrf.mxu0
      %v767 = vadd.f32 0.0, %v766
      %768 = vdwg.mxu0
      %v769 = vadd.f32 %v644, %v707
      %v770 = vadd.f32 %v645, %v727
      %v771 = vadd.f32 %v646, %v747
      %v772 = vadd.f32 %v647, %v767
      %773 = vst [vmem:[#allocation1] ss:$2 sm:$0xff] %v170
      %s774 = scalar_lea.vmem [#allocation1], 16
      %775 = vst [vmem:[%s774] ss:$2 sm:$0xff] %v171
      %v776 = vld.sshfl [vmem:[#allocation1] sm:$0xff pattern:$0x75316420]
      %v777 = vld.sshfl [vmem:[#allocation1 + $0x8] sm:$0xff pattern:$0x75316420]
      %v778 = vld.sshfl [vmem:[#allocation1 + $0x10] sm:$0xff pattern:$0x75316420]
      %v779 = vld.sshfl [vmem:[#allocation1 + $0x18] sm:$0xff pattern:$0x75316420]
      %784 = vrot.lane.b32.xlu0 %v776, 108
      %v785 = vpop.permute.xlu0 %784
      %786 = vrot.lane.b32.xlu0 %v777, 108
      %v787 = vpop.permute.xlu0 %786
      %788 = vrot.lane.b32.xlu0 %v778, 108
      %v789 = vpop.permute.xlu0 %788
      %790 = vrot.lane.b32.xlu0 %v779, 108
      %v791 = vpop.permute.xlu0 %790
      %vm792 = vcmp.lt.s32.totalorder %v195, 108
      %v793 = vsel %vm792, %v789, %v791
      %v794 = vsel %vm792, %v787, %v789
      %v795 = vsel %vm792, %v785, %v787
      %v796 = vsel %vm792, %v791, %v785
      %s797 = scalar_lea.vmem %s1, 40
      %v798 = vld [vmem:[%s797] sm:$0xff]
      %v800 = vsel %vm203, %v798, 0
      %v803 = vsel %vm207, %v795, 0
      %v806 = vsel %vm207, %v794, 0
      %v809 = vsel %vm207, %v793, 0
      %v812 = vsel %vm207, %v796, 0
      %814 = vmatpush.msra.mxu0 0.0
      %815 = vmatpush.msra.mxu0 0.0
      %816 = vmatpush.msra.mxu0 0.0
      %817 = vmatpush.msra.mxu0 0.0
      %818 = vmatpush.msra.mxu0 0.0
      %819 = vmatpush.msra.mxu0 0.0
      %820 = vmatpush.msra.mxu0 0.0
      %821 = vmatpush.msra.mxu0 0.0
      %822 = vmatpush.msra.mxu0 0.0
      %823 = vmatpush.msra.mxu0 0.0
      %824 = vmatpush.msra.mxu0 0.0
      %825 = vmatpush.msra.mxu0 0.0
      %826 = vmatpush.msra.mxu0 0.0
      %827 = vmatpush.msra.mxu0 0.0
      %828 = vmatpush.msra.mxu0 0.0
      %829 = vmatpush.msra.mxu0 %v803
      %830 = vmatmul.f32.gmra.mxu0 %v800
      %v831 = vpop.f32.mrf.mxu0
      %v832 = vadd.f32 0.0, %v831
      %833 = vdwg.mxu0
      %834 = vmatpush.msra.mxu0 0.0
      %835 = vmatpush.msra.mxu0 0.0
      %836 = vmatpush.msra.mxu0 0.0
      %837 = vmatpush.msra.mxu0 0.0
      %838 = vmatpush.msra.mxu0 0.0
      %839 = vmatpush.msra.mxu0 0.0
      %840 = vmatpush.msra.mxu0 0.0
      %841 = vmatpush.msra.mxu0 0.0
      %842 = vmatpush.msra.mxu0 0.0
      %843 = vmatpush.msra.mxu0 0.0
      %844 = vmatpush.msra.mxu0 0.0
      %845 = vmatpush.msra.mxu0 0.0
      %846 = vmatpush.msra.mxu0 0.0
      %847 = vmatpush.msra.mxu0 0.0
      %848 = vmatpush.msra.mxu0 0.0
      %849 = vmatpush.msra.mxu0 %v806
      %850 = vmatmul.f32.gmra.mxu0 %v800
      %v851 = vpop.f32.mrf.mxu0
      %v852 = vadd.f32 0.0, %v851
      %853 = vdwg.mxu0
      %854 = vmatpush.msra.mxu0 0.0
      %855 = vmatpush.msra.mxu0 0.0
      %856 = vmatpush.msra.mxu0 0.0
      %857 = vmatpush.msra.mxu0 0.0
      %858 = vmatpush.msra.mxu0 0.0
      %859 = vmatpush.msra.mxu0 0.0
      %860 = vmatpush.msra.mxu0 0.0
      %861 = vmatpush.msra.mxu0 0.0
      %862 = vmatpush.msra.mxu0 0.0
      %863 = vmatpush.msra.mxu0 0.0
      %864 = vmatpush.msra.mxu0 0.0
      %865 = vmatpush.msra.mxu0 0.0
      %866 = vmatpush.msra.mxu0 0.0
      %867 = vmatpush.msra.mxu0 0.0
      %868 = vmatpush.msra.mxu0 0.0
      %869 = vmatpush.msra.mxu0 %v809
      %870 = vmatmul.f32.gmra.mxu0 %v800
      %v871 = vpop.f32.mrf.mxu0
      %v872 = vadd.f32 0.0, %v871
      %873 = vdwg.mxu0
      %874 = vmatpush.msra.mxu0 0.0
      %875 = vmatpush.msra.mxu0 0.0
      %876 = vmatpush.msra.mxu0 0.0
      %877 = vmatpush.msra.mxu0 0.0
      %878 = vmatpush.msra.mxu0 0.0
      %879 = vmatpush.msra.mxu0 0.0
      %880 = vmatpush.msra.mxu0 0.0
      %881 = vmatpush.msra.mxu0 0.0
      %882 = vmatpush.msra.mxu0 0.0
      %883 = vmatpush.msra.mxu0 0.0
      %884 = vmatpush.msra.mxu0 0.0
      %885 = vmatpush.msra.mxu0 0.0
      %886 = vmatpush.msra.mxu0 0.0
      %887 = vmatpush.msra.mxu0 0.0
      %888 = vmatpush.msra.mxu0 0.0
      %889 = vmatpush.msra.mxu0 %v812
      %890 = vmatmul.f32.gmra.mxu0 %v800
      %v891 = vpop.f32.mrf.mxu0
      %v892 = vadd.f32 0.0, %v891
      %893 = vdwg.mxu0
      %v894 = vadd.f32 %v769, %v832
      %v895 = vadd.f32 %v770, %v852
      %v896 = vadd.f32 %v771, %v872
      %v897 = vadd.f32 %v772, %v892
      %898 = vst [vmem:[#allocation1] ss:$2 sm:$0xff] %v170
      %s899 = scalar_lea.vmem [#allocation1], 16
      %900 = vst [vmem:[%s899] ss:$2 sm:$0xff] %v171
      %v901 = vld.sshfl [vmem:[#allocation1] sm:$0xff pattern:$0x75316420]
      %v902 = vld.sshfl [vmem:[#allocation1 + $0x8] sm:$0xff pattern:$0x75316420]
      %v903 = vld.sshfl [vmem:[#allocation1 + $0x10] sm:$0xff pattern:$0x75316420]
      %v904 = vld.sshfl [vmem:[#allocation1 + $0x18] sm:$0xff pattern:$0x75316420]
      %909 = vrot.lane.b32.xlu0 %v901, 92
      %v910 = vpop.permute.xlu0 %909
      %911 = vrot.lane.b32.xlu0 %v902, 92
      %v912 = vpop.permute.xlu0 %911
      %913 = vrot.lane.b32.xlu0 %v903, 92
      %v914 = vpop.permute.xlu0 %913
      %915 = vrot.lane.b32.xlu0 %v904, 92
      %v916 = vpop.permute.xlu0 %915
      %vm917 = vcmp.lt.s32.totalorder %v195, 92
      %v918 = vsel %vm917, %v914, %v916
      %v919 = vsel %vm917, %v912, %v914
      %v920 = vsel %vm917, %v910, %v912
      %v921 = vsel %vm917, %v916, %v910
      %s922 = scalar_lea.vmem %s1, 48
      %v923 = vld [vmem:[%s922] sm:$0xff]
      %v925 = vsel %vm203, %v923, 0
      %v928 = vsel %vm207, %v920, 0
      %v931 = vsel %vm207, %v919, 0
      %v934 = vsel %vm207, %v918, 0
      %v937 = vsel %vm207, %v921, 0
      %939 = vmatpush.msra.mxu0 0.0
      %940 = vmatpush.msra.mxu0 0.0
      %941 = vmatpush.msra.mxu0 0.0
      %942 = vmatpush.msra.mxu0 0.0
      %943 = vmatpush.msra.mxu0 0.0
      %944 = vmatpush.msra.mxu0 0.0
      %945 = vmatpush.msra.mxu0 0.0
      %946 = vmatpush.msra.mxu0 0.0
      %947 = vmatpush.msra.mxu0 0.0
      %948 = vmatpush.msra.mxu0 0.0
      %949 = vmatpush.msra.mxu0 0.0
      %950 = vmatpush.msra.mxu0 0.0
      %951 = vmatpush.msra.mxu0 0.0
      %952 = vmatpush.msra.mxu0 0.0
      %953 = vmatpush.msra.mxu0 0.0
      %954 = vmatpush.msra.mxu0 %v928
      %955 = vmatmul.f32.gmra.mxu0 %v925
      %v956 = vpop.f32.mrf.mxu0
      %v957 = vadd.f32 0.0, %v956
      %958 = vdwg.mxu0
      %959 = vmatpush.msra.mxu0 0.0
      %960 = vmatpush.msra.mxu0 0.0
      %961 = vmatpush.msra.mxu0 0.0
      %962 = vmatpush.msra.mxu0 0.0
      %963 = vmatpush.msra.mxu0 0.0
      %964 = vmatpush.msra.mxu0 0.0
      %965 = vmatpush.msra.mxu0 0.0
      %966 = vmatpush.msra.mxu0 0.0
      %967 = vmatpush.msra.mxu0 0.0
      %968 = vmatpush.msra.mxu0 0.0
      %969 = vmatpush.msra.mxu0 0.0
      %970 = vmatpush.msra.mxu0 0.0
      %971 = vmatpush.msra.mxu0 0.0
      %972 = vmatpush.msra.mxu0 0.0
      %973 = vmatpush.msra.mxu0 0.0
      %974 = vmatpush.msra.mxu0 %v931
      %975 = vmatmul.f32.gmra.mxu0 %v925
      %v976 = vpop.f32.mrf.mxu0
      %v977 = vadd.f32 0.0, %v976
      %978 = vdwg.mxu0
      %979 = vmatpush.msra.mxu0 0.0
      %980 = vmatpush.msra.mxu0 0.0
      %981 = vmatpush.msra.mxu0 0.0
      %982 = vmatpush.msra.mxu0 0.0
      %983 = vmatpush.msra.mxu0 0.0
      %984 = vmatpush.msra.mxu0 0.0
      %985 = vmatpush.msra.mxu0 0.0
      %986 = vmatpush.msra.mxu0 0.0
      %987 = vmatpush.msra.mxu0 0.0
      %988 = vmatpush.msra.mxu0 0.0
      %989 = vmatpush.msra.mxu0 0.0
      %990 = vmatpush.msra.mxu0 0.0
      %991 = vmatpush.msra.mxu0 0.0
      %992 = vmatpush.msra.mxu0 0.0
      %993 = vmatpush.msra.mxu0 0.0
      %994 = vmatpush.msra.mxu0 %v934
      %995 = vmatmul.f32.gmra.mxu0 %v925
      %v996 = vpop.f32.mrf.mxu0
      %v997 = vadd.f32 0.0, %v996
      %998 = vdwg.mxu0
      %999 = vmatpush.msra.mxu0 0.0
      %1000 = vmatpush.msra.mxu0 0.0
      %1001 = vmatpush.msra.mxu0 0.0
      %1002 = vmatpush.msra.mxu0 0.0
      %1003 = vmatpush.msra.mxu0 0.0
      %1004 = vmatpush.msra.mxu0 0.0
      %1005 = vmatpush.msra.mxu0 0.0
      %1006 = vmatpush.msra.mxu0 0.0
      %1007 = vmatpush.msra.mxu0 0.0
      %1008 = vmatpush.msra.mxu0 0.0
      %1009 = vmatpush.msra.mxu0 0.0
      %1010 = vmatpush.msra.mxu0 0.0
      %1011 = vmatpush.msra.mxu0 0.0
      %1012 = vmatpush.msra.mxu0 0.0
      %1013 = vmatpush.msra.mxu0 0.0
      %1014 = vmatpush.msra.mxu0 %v937
      %1015 = vmatmul.f32.gmra.mxu0 %v925
      %v1016 = vpop.f32.mrf.mxu0
      %v1017 = vadd.f32 0.0, %v1016
      %1018 = vdwg.mxu0
      %v1019 = vadd.f32 %v894, %v957
      %v1020 = vadd.f32 %v895, %v977
      %v1021 = vadd.f32 %v896, %v997
      %v1022 = vadd.f32 %v897, %v1017
      %1023 = vst [vmem:[#allocation1] ss:$2 sm:$0xff] %v170
      %s1024 = scalar_lea.vmem [#allocation1], 16
      %1025 = vst [vmem:[%s1024] ss:$2 sm:$0xff] %v171
      %v1026 = vld.sshfl [vmem:[#allocation1] sm:$0xff pattern:$0x75316420]
      %v1027 = vld.sshfl [vmem:[#allocation1 + $0x8] sm:$0xff pattern:$0x75316420]
      %v1028 = vld.sshfl [vmem:[#allocation1 + $0x10] sm:$0xff pattern:$0x75316420]
      %v1029 = vld.sshfl [vmem:[#allocation1 + $0x18] sm:$0xff pattern:$0x75316420]
      %1034 = vrot.lane.b32.xlu0 %v1026, 91
      %v1035 = vpop.permute.xlu0 %1034
      %1036 = vrot.lane.b32.xlu0 %v1027, 91
      %v1037 = vpop.permute.xlu0 %1036
      %1038 = vrot.lane.b32.xlu0 %v1028, 91
      %v1039 = vpop.permute.xlu0 %1038
      %1040 = vrot.lane.b32.xlu0 %v1029, 91
      %v1041 = vpop.permute.xlu0 %1040
      %vm1042 = vcmp.lt.s32.totalorder %v195, 91
      %v1043 = vsel %vm1042, %v1039, %v1041
      %v1044 = vsel %vm1042, %v1037, %v1039
      %v1045 = vsel %vm1042, %v1035, %v1037
      %v1046 = vsel %vm1042, %v1041, %v1035
      %s1047 = scalar_lea.vmem %s1, 56
      %v1048 = vld [vmem:[%s1047] sm:$0xff]
      %v1050 = vsel %vm203, %v1048, 0
      %v1053 = vsel %vm207, %v1045, 0
      %v1056 = vsel %vm207, %v1044, 0
      %v1059 = vsel %vm207, %v1043, 0
      %v1062 = vsel %vm207, %v1046, 0
      %1064 = vmatpush.msra.mxu0 0.0
      %1065 = vmatpush.msra.mxu0 0.0
      %1066 = vmatpush.msra.mxu0 0.0
      %1067 = vmatpush.msra.mxu0 0.0
      %1068 = vmatpush.msra.mxu0 0.0
      %1069 = vmatpush.msra.mxu0 0.0
      %1070 = vmatpush.msra.mxu0 0.0
      %1071 = vmatpush.msra.mxu0 0.0
      %1072 = vmatpush.msra.mxu0 0.0
      %1073 = vmatpush.msra.mxu0 0.0
      %1074 = vmatpush.msra.mxu0 0.0
      %1075 = vmatpush.msra.mxu0 0.0
      %1076 = vmatpush.msra.mxu0 0.0
      %1077 = vmatpush.msra.mxu0 0.0
      %1078 = vmatpush.msra.mxu0 0.0
      %1079 = vmatpush.msra.mxu0 %v1053
      %1080 = vmatmul.f32.gmra.mxu0 %v1050
      %v1081 = vpop.f32.mrf.mxu0
      %v1082 = vadd.f32 0.0, %v1081
      %1083 = vdwg.mxu0
      %1084 = vmatpush.msra.mxu0 0.0
      %1085 = vmatpush.msra.mxu0 0.0
      %1086 = vmatpush.msra.mxu0 0.0
      %1087 = vmatpush.msra.mxu0 0.0
      %1088 = vmatpush.msra.mxu0 0.0
      %1089 = vmatpush.msra.mxu0 0.0
      %1090 = vmatpush.msra.mxu0 0.0
      %1091 = vmatpush.msra.mxu0 0.0
      %1092 = vmatpush.msra.mxu0 0.0
      %1093 = vmatpush.msra.mxu0 0.0
      %1094 = vmatpush.msra.mxu0 0.0
      %1095 = vmatpush.msra.mxu0 0.0
      %1096 = vmatpush.msra.mxu0 0.0
      %1097 = vmatpush.msra.mxu0 0.0
      %1098 = vmatpush.msra.mxu0 0.0
      %1099 = vmatpush.msra.mxu0 %v1056
      %1100 = vmatmul.f32.gmra.mxu0 %v1050
      %v1101 = vpop.f32.mrf.mxu0
      %v1102 = vadd.f32 0.0, %v1101
      %1103 = vdwg.mxu0
      %1104 = vmatpush.msra.mxu0 0.0
      %1105 = vmatpush.msra.mxu0 0.0
      %1106 = vmatpush.msra.mxu0 0.0
      %1107 = vmatpush.msra.mxu0 0.0
      %1108 = vmatpush.msra.mxu0 0.0
      %1109 = vmatpush.msra.mxu0 0.0
      %1110 = vmatpush.msra.mxu0 0.0
      %1111 = vmatpush.msra.mxu0 0.0
      %1112 = vmatpush.msra.mxu0 0.0
      %1113 = vmatpush.msra.mxu0 0.0
      %1114 = vmatpush.msra.mxu0 0.0
      %1115 = vmatpush.msra.mxu0 0.0
      %1116 = vmatpush.msra.mxu0 0.0
      %1117 = vmatpush.msra.mxu0 0.0
      %1118 = vmatpush.msra.mxu0 0.0
      %1119 = vmatpush.msra.mxu0 %v1059
      %1120 = vmatmul.f32.gmra.mxu0 %v1050
      %v1121 = vpop.f32.mrf.mxu0
      %v1122 = vadd.f32 0.0, %v1121
      %1123 = vdwg.mxu0
      %1124 = vmatpush.msra.mxu0 0.0
      %1125 = vmatpush.msra.mxu0 0.0
      %1126 = vmatpush.msra.mxu0 0.0
      %1127 = vmatpush.msra.mxu0 0.0
      %1128 = vmatpush.msra.mxu0 0.0
      %1129 = vmatpush.msra.mxu0 0.0
      %1130 = vmatpush.msra.mxu0 0.0
      %1131 = vmatpush.msra.mxu0 0.0
      %1132 = vmatpush.msra.mxu0 0.0
      %1133 = vmatpush.msra.mxu0 0.0
      %1134 = vmatpush.msra.mxu0 0.0
      %1135 = vmatpush.msra.mxu0 0.0
      %1136 = vmatpush.msra.mxu0 0.0
      %1137 = vmatpush.msra.mxu0 0.0
      %1138 = vmatpush.msra.mxu0 0.0
      %1139 = vmatpush.msra.mxu0 %v1062
      %1140 = vmatmul.f32.gmra.mxu0 %v1050
      %v1141 = vpop.f32.mrf.mxu0
      %v1142 = vadd.f32 0.0, %v1141
      %1143 = vdwg.mxu0
      %v1144 = vadd.f32 %v1019, %v1082
      %v1145 = vadd.f32 %v1020, %v1102
      %v1146 = vadd.f32 %v1021, %v1122
      %v1147 = vadd.f32 %v1022, %v1142
      %1148 = vst [vmem:[#allocation1] ss:$2 sm:$0xff] %v170
      %s1149 = scalar_lea.vmem [#allocation1], 16
      %1150 = vst [vmem:[%s1149] ss:$2 sm:$0xff] %v171
      %v1151 = vld.sshfl [vmem:[#allocation1] sm:$0xff pattern:$0x75316420]
      %v1152 = vld.sshfl [vmem:[#allocation1 + $0x8] sm:$0xff pattern:$0x75316420]
      %v1153 = vld.sshfl [vmem:[#allocation1 + $0x10] sm:$0xff pattern:$0x75316420]
      %v1154 = vld.sshfl [vmem:[#allocation1 + $0x18] sm:$0xff pattern:$0x75316420]
      %1159 = vrot.lane.b32.xlu0 %v1151, 90
      %v1160 = vpop.permute.xlu0 %1159
      %1161 = vrot.lane.b32.xlu0 %v1152, 90
      %v1162 = vpop.permute.xlu0 %1161
      %1163 = vrot.lane.b32.xlu0 %v1153, 90
      %v1164 = vpop.permute.xlu0 %1163
      %1165 = vrot.lane.b32.xlu0 %v1154, 90
      %v1166 = vpop.permute.xlu0 %1165
      %vm1167 = vcmp.lt.s32.totalorder %v195, 90
      %v1168 = vsel %vm1167, %v1164, %v1166
      %v1169 = vsel %vm1167, %v1162, %v1164
      %v1170 = vsel %vm1167, %v1160, %v1162
      %v1171 = vsel %vm1167, %v1166, %v1160
      %s1172 = scalar_lea.vmem %s1, 64
      %v1173 = vld [vmem:[%s1172] sm:$0xff]
      %v1175 = vsel %vm203, %v1173, 0
      %v1178 = vsel %vm207, %v1170, 0
      %v1181 = vsel %vm207, %v1169, 0
      %v1184 = vsel %vm207, %v1168, 0
      %v1187 = vsel %vm207, %v1171, 0
      %1189 = vmatpush.msra.mxu0 0.0
      %1190 = vmatpush.msra.mxu0 0.0
      %1191 = vmatpush.msra.mxu0 0.0
      %1192 = vmatpush.msra.mxu0 0.0
      %1193 = vmatpush.msra.mxu0 0.0
      %1194 = vmatpush.msra.mxu0 0.0
      %1195 = vmatpush.msra.mxu0 0.0
      %1196 = vmatpush.msra.mxu0 0.0
      %1197 = vmatpush.msra.mxu0 0.0
      %1198 = vmatpush.msra.mxu0 0.0
      %1199 = vmatpush.msra.mxu0 0.0
      %1200 = vmatpush.msra.mxu0 0.0
      %1201 = vmatpush.msra.mxu0 0.0
      %1202 = vmatpush.msra.mxu0 0.0
      %1203 = vmatpush.msra.mxu0 0.0
      %1204 = vmatpush.msra.mxu0 %v1178
      %1205 = vmatmul.f32.gmra.mxu0 %v1175
      %v1206 = vpop.f32.mrf.mxu0
      %v1207 = vadd.f32 0.0, %v1206
      %1208 = vdwg.mxu0
      %1209 = vmatpush.msra.mxu0 0.0
      %1210 = vmatpush.msra.mxu0 0.0
      %1211 = vmatpush.msra.mxu0 0.0
      %1212 = vmatpush.msra.mxu0 0.0
      %1213 = vmatpush.msra.mxu0 0.0
      %1214 = vmatpush.msra.mxu0 0.0
      %1215 = vmatpush.msra.mxu0 0.0
      %1216 = vmatpush.msra.mxu0 0.0
      %1217 = vmatpush.msra.mxu0 0.0
      %1218 = vmatpush.msra.mxu0 0.0
      %1219 = vmatpush.msra.mxu0 0.0
      %1220 = vmatpush.msra.mxu0 0.0
      %1221 = vmatpush.msra.mxu0 0.0
      %1222 = vmatpush.msra.mxu0 0.0
      %1223 = vmatpush.msra.mxu0 0.0
      %1224 = vmatpush.msra.mxu0 %v1181
      %1225 = vmatmul.f32.gmra.mxu0 %v1175
      %v1226 = vpop.f32.mrf.mxu0
      %v1227 = vadd.f32 0.0, %v1226
      %1228 = vdwg.mxu0
      %1229 = vmatpush.msra.mxu0 0.0
      %1230 = vmatpush.msra.mxu0 0.0
      %1231 = vmatpush.msra.mxu0 0.0
      %1232 = vmatpush.msra.mxu0 0.0
      %1233 = vmatpush.msra.mxu0 0.0
      %1234 = vmatpush.msra.mxu0 0.0
      %1235 = vmatpush.msra.mxu0 0.0
      %1236 = vmatpush.msra.mxu0 0.0
      %1237 = vmatpush.msra.mxu0 0.0
      %1238 = vmatpush.msra.mxu0 0.0
      %1239 = vmatpush.msra.mxu0 0.0
      %1240 = vmatpush.msra.mxu0 0.0
      %1241 = vmatpush.msra.mxu0 0.0
      %1242 = vmatpush.msra.mxu0 0.0
      %1243 = vmatpush.msra.mxu0 0.0
      %1244 = vmatpush.msra.mxu0 %v1184
      %1245 = vmatmul.f32.gmra.mxu0 %v1175
      %v1246 = vpop.f32.mrf.mxu0
      %v1247 = vadd.f32 0.0, %v1246
      %1248 = vdwg.mxu0
      %1249 = vmatpush.msra.mxu0 0.0
      %1250 = vmatpush.msra.mxu0 0.0
      %1251 = vmatpush.msra.mxu0 0.0
      %1252 = vmatpush.msra.mxu0 0.0
      %1253 = vmatpush.msra.mxu0 0.0
      %1254 = vmatpush.msra.mxu0 0.0
      %1255 = vmatpush.msra.mxu0 0.0
      %1256 = vmatpush.msra.mxu0 0.0
      %1257 = vmatpush.msra.mxu0 0.0
      %1258 = vmatpush.msra.mxu0 0.0
      %1259 = vmatpush.msra.mxu0 0.0
      %1260 = vmatpush.msra.mxu0 0.0
      %1261 = vmatpush.msra.mxu0 0.0
      %1262 = vmatpush.msra.mxu0 0.0
      %1263 = vmatpush.msra.mxu0 0.0
      %1264 = vmatpush.msra.mxu0 %v1187
      %1265 = vmatmul.f32.gmra.mxu0 %v1175
      %v1266 = vpop.f32.mrf.mxu0
      %v1267 = vadd.f32 0.0, %v1266
      %1268 = vdwg.mxu0
      %v1269 = vadd.f32 %v1144, %v1207
      %v1270 = vadd.f32 %v1145, %v1227
      %v1271 = vadd.f32 %v1146, %v1247
      %v1272 = vadd.f32 %v1147, %v1267
      %v1273 = vld [vmem:[%s2] sm:$0xf]
      %v1275 = vperm.slane %v1273, 0
      %v1276 = vperm.slane %v1273, 1
      %v1277 = vperm.slane %v1273, 2
      %v1278 = vperm.slane %v1273, 3
      %v1283 = vmul.f32 %v1269, %v1275
      %v1284 = vmul.f32 %v1270, %v1276
      %v1285 = vmul.f32 %v1271, %v1277
      %v1286 = vmul.f32 %v1272, %v1278
      %v1287 = vadd.f32 %v1283, %v1284
      %v1288 = vadd.f32 %v1287, %v1285
      %v1289 = vadd.f32 %v1288, %v1286
      %1290 = vadd.xlane.f32.xlu0 %v1289
      %v1291 = vpop.xlane.xlu0 %1290
      %v1292 = vmul.f32 %v1283, %v1269
      %v1293 = vmul.f32 %v1284, %v1270
      %v1294 = vmul.f32 %v1285, %v1271
      %v1295 = vmul.f32 %v1286, %v1272
      %v1296 = vadd.f32 %v1292, %v1293
      %v1297 = vadd.f32 %v1296, %v1294
      %v1298 = vadd.f32 %v1297, %v1295
      %1299 = vadd.xlane.f32.xlu0 %v1298
      %v1300 = vpop.xlane.xlu0 %1299
      %vm1301 = vcmask 7168
      %v1302 = vsel %vm1301, %v1291, %v1300
      %vm1303 = vcmask 15360
      %1304 = vst.msk [vmem:[%s168] sm:$0xff] %vm1303, %v1302
      %p1305 = scmp.lt.s32.totalorder %s14, 1
      %s1306 = scalar_select %p1305, %s14, 1
      %s1307 = smul.addr %s1306, 8
      %s1308 = scalar_lea.vmem %s3, %s1307
      // Predicated region
      $region33: #{conv_bn_prelu.2} parent=31 // pred_check
        %p1309 = pneg %p100
      $region34: #{conv_bn_prelu.2} parent=31 // pred_check_branch
        %1311 = sbr.rel (%p1309) target = $region36
      $region35: #{conv_bn_prelu.2} parent=31 // pred_region
        _
      $region36: #{conv_bn_prelu.2} parent=31 // pred_fallthru
        _
    $region32: #{conv_bn_prelu.2} parent=5 // pred_fallthru
      _
    %p1312 = scmp.le.s32.totalorder 2, %s9
    // Predicated region
    $region37: #{conv_bn_prelu.2} parent=5 // pred_check
      %p1313 = pneg %p1312
    $region38: #{conv_bn_prelu.2} parent=5 // pred_check_branch
      %1315 = sbr.rel (%p1313) target = $region40
    $region39: #{conv_bn_prelu.2} parent=5 // pred_region
      %s1316 = ssub.s32 %s9, 2
      // Predicated region
      $region41: #{conv_bn_prelu.2} parent=39 // pred_check
        %p1317 = pneg %p106
      $region42: #{conv_bn_prelu.2} parent=39 // pred_check_branch
        %1319 = sbr.rel (%p1317) target = $region44
      $region43: #{conv_bn_prelu.2} parent=39 // pred_region
        %p1320 = scmp.lt.s32.totalorder %s15, 1
        %s1321 = scalar_select %p1320, %s15, 1
        %s1322 = smul.addr %s1321, 8
        %s1323 = scalar_lea.vmem %s3, %s1322
      $region44: #{conv_bn_prelu.2} parent=39 // pred_fallthru
        _
    $region40: #{conv_bn_prelu.2} parent=5 // pred_fallthru
      _
  $region6: #{conv_bn_prelu.2} parent=0 // loop_footer
    %s13 = sadd.s32 1, %s9
  $region7: #{conv_bn_prelu.2} parent=0 // loop_footer_branch
    %8 = sbr.rel target = $region3
  $region8: #{conv_bn_prelu.2} parent=0 // loop_exit
    _

</llo_original>
